<compile_context>
chip_gen: v7x
topology: tpu7x:2x2x1
jax: 0.10.0
libtpu: 0.0.40
codegen_flags: <defaults>
</compile_context>

<pallas_src>
import jax
import jax.numpy as jnp
from jax.experimental import pallas as pl
from jax.experimental.pallas import tpu as pltpu


def ar_lstm_kernel(xg_ref, mask_ref, h0_ref, c0_ref, z0_ref,
                   wz_ref, wh_ref, wfc_ref, bfc_ref,
                   out_ref, hout_ref, cout_ref):
    """Single invocation runs the whole T-step recurrence.

    xg_ref   : (T, B, 4H)     precomputed  x_t @ (s*Wx)^T + s*(b_ih + b_hh)
                              (i/f/o rows pre-scaled by 0.5 for the tanh trick)
    mask_ref : (T, B, D_out)  precomputed, pre-broadcast  (t < seq_len) as f32
    h0/c0/z0 : (B,H)/(B,H)/(B,D_out)  initial state
    wz_ref   : (D_out, 4H)    scaled Wz^T   (recurrent z weight)
    wh_ref   : (H, 4H)        scaled Wh^T   (recurrent h weight)
    wfc_ref  : (H, D_out)     W_fc^T
    bfc_ref  : (1, D_out)     b_fc
    out_ref  : (B, T*D_out)   lane-dense packed outputs (step t at lanes
                              [t*D_out, (t+1)*D_out))
    """
    T = xg_ref.shape[0]
    H = h0_ref.shape[1]

    # Weights loaded once; resident in vregs/VMEM across the loop.
    wz = wz_ref[...]
    wh = wh_ref[...]
    wfc = wfc_ref[...]
    bfc = bfc_ref[...]

    # State carried in values (vregs), not scratch.
    h = h0_ref[...]
    c = c0_ref[...]
    z = z0_ref[...]

    zs = []
    # Fully-unrolled static time loop (T is tiny and static).
    for t in range(T):
        # Split recurrent matmuls (no per-step concat on the critical path).
        gates = (xg_ref[t]
                 + jnp.dot(h, wh, preferred_element_type=jnp.float32)
                 + jnp.dot(z, wz, preferred_element_type=jnp.float32))  # (B, 4H)

        # Single EUP pass: tanh of the scaled pre-activations; sigmoids
        # reconstructed as 0.5*(tanh(x/2) + 1) on the VPU.
        th = jnp.tanh(gates)
        i_g = 0.5 * (th[:, 0 * H:1 * H] + 1.0)
        f_g = 0.5 * (th[:, 1 * H:2 * H] + 1.0)
        g_g = th[:, 2 * H:3 * H]
        o_g = 0.5 * (th[:, 3 * H:4 * H] + 1.0)

        c = f_g * c + i_g * g_g
        h = o_g * jnp.tanh(c)

        # z = tanh(h @ W_fc^T + b_fc) * (t < seq_len)   (mask pre-broadcast)
        z = jnp.tanh(jnp.dot(h, wfc, preferred_element_type=jnp.float32)
                     + bfc) * mask_ref[t]
        zs.append(z)

    # Lane-dense packed output: one unmasked (B, T*D_out) store, one dense DMA.
    out_ref[...] = jnp.concatenate(zs, axis=1)
    # Final state written exactly once.
    hout_ref[...] = h
    cout_ref[...] = c


def auto_regressive_lstm(inputs, initial_state, sequence_lengths, params):
    """inputs: (T, B, D_in) f32; initial_state = (h0, c0, z0); seq_lengths: (B,) int."""
    T, B, D_in = inputs.shape
    h0, c0, z0 = initial_state
    H = h0.shape[1]
    D_out = z0.shape[1]

    w_ih, w_hh, b_ih, b_hh, w_fc, b_fc = params

    # Pre-scale i/f/o gate rows by 0.5 so sigmoid(x) == 0.5*(tanh(x/2)+1);
    # the g (cell-candidate) rows stay unscaled (true tanh).
    # PyTorch LSTMCell gate row order: [i, f, g, o].
    scale = jnp.concatenate([
        jnp.full((2 * H,), 0.5, jnp.float32),   # i, f
        jnp.ones((H,), jnp.float32),            # g
        jnp.full((H,), 0.5, jnp.float32),       # o
    ])                                          # (4H,)

    # Split W_ih (4H, D_in + D_out) into x-part / z-part; transpose; apply scale.
    wx_t = jnp.transpose(w_ih[:, :D_in]) * scale[None, :]   # (D_in, 4H)
    wz_t = jnp.transpose(w_ih[:, D_in:]) * scale[None, :]   # (D_out, 4H)
    wh_t = jnp.transpose(w_hh) * scale[None, :]             # (H, 4H)
    b = ((b_ih + b_hh) * scale).reshape(1, 4 * H)            # (1, 4H)
    wfc_t = jnp.transpose(w_fc)                              # (H, D_out)
    bfc = b_fc.reshape(1, D_out)                             # (1, D_out)

    # Hoisted (cuDNN-style) input projection: one (T*B, D_in)x(D_in, 4H) matmul
    # for all timesteps, bias folded in.
    xg = (inputs.reshape(T * B, D_in) @ wx_t + b).reshape(T, B, 4 * H)

    # Activity mask, pre-broadcast to full lane width (tiny: T*B*D_out*4 bytes).
    mask2d = (jnp.arange(T, dtype=jnp.int32)[:, None]
              < sequence_lengths.astype(jnp.int32)[None, :]).astype(jnp.float32)
    mask = jnp.broadcast_to(mask2d[:, :, None], (T, B, D_out))   # (T, B, D_out)

    vmem = pl.BlockSpec(memory_space=pltpu.MemorySpace.VMEM)

    out_packed, h_f, c_f = pl.pallas_call(
        ar_lstm_kernel,
        out_shape=(
            jax.ShapeDtypeStruct((B, T * D_out), jnp.float32),
            jax.ShapeDtypeStruct((B, H), jnp.float32),
            jax.ShapeDtypeStruct((B, H), jnp.float32),
        ),
        in_specs=[vmem] * 9,
        out_specs=(vmem, vmem, vmem),
    )(xg, mask, h0, c0, z0, wz_t, wh_t, wfc_t, bfc)

    # Unpack lane-dense output back to (T, B, D_out) (cheap XLA reshape/transpose).
    outputs = jnp.transpose(out_packed.reshape(B, T, D_out), (1, 0, 2))
    return outputs, (h_f, c_f)


def reference_forward(inputs, initial_state, sequence_lengths, params):
    """Pure-JAX reference matching the PyTorch module in eval mode."""
    w_ih, w_hh, b_ih, b_hh, w_fc, b_fc = params
    T, B, _ = inputs.shape
    H = w_hh.shape[1]
    h, c, z = initial_state
    outs = []
    for t in range(T):
        combined = jnp.concatenate([inputs[t], z], axis=1)
        gates = combined @ w_ih.T + b_ih + h @ w_hh.T + b_hh
        i_g = jax.nn.sigmoid(gates[:, 0 * H:1 * H])
        f_g = jax.nn.sigmoid(gates[:, 1 * H:2 * H])
        g_g = jnp.tanh(gates[:, 2 * H:3 * H])
        o_g = jax.nn.sigmoid(gates[:, 3 * H:4 * H])
        c = f_g * c + i_g * g_g
        h = o_g * jnp.tanh(c)
        active = (t < sequence_lengths).astype(jnp.float32)[:, None]
        z = jnp.tanh(h @ w_fc.T + b_fc) * active
        outs.append(z[None])
    return jnp.concatenate(outs, axis=0), (h, c)


if __name__ == "__main__":
    T, B = 8, 8
    input_size, hidden_size, output_size = 16, 32, 16

    key = jax.random.PRNGKey(0)
    ks = jax.random.split(key, 12)
    bound = 1.0 / jnp.sqrt(hidden_size)
    uni = lambda k, shape: jax.random.uniform(k, shape, jnp.float32, -bound, bound)

    # Parameters (shapes as in nn.LSTMCell(input+output, hidden) + nn.Linear(hidden, output)).
    w_ih = uni(ks[0], (4 * hidden_size, input_size + output_size))
    w_hh = uni(ks[1], (4 * hidden_size, hidden_size))
    b_ih = uni(ks[2], (4 * hidden_size,))
    b_hh = uni(ks[3], (4 * hidden_size,))
    w_fc = uni(ks[4], (output_size, hidden_size))
    b_fc = uni(ks[5], (output_size,))
    params = (w_ih, w_hh, b_ih, b_hh, w_fc, b_fc)

    # Inputs and initial state.
    inputs = jax.random.normal(ks[6], (T, B, input_size), jnp.float32)
    h0 = jax.random.normal(ks[7], (B, hidden_size), jnp.float32)
    c0 = jax.random.normal(ks[8], (B, hidden_size), jnp.float32)
    z0 = jax.random.normal(ks[9], (B, output_size), jnp.float32)
    sequence_lengths = jax.random.randint(ks[10], (B,), 1, T + 1)   # int32

    outputs, (h_f, c_f) = auto_regressive_lstm(
        inputs, (h0, c0, z0), sequence_lengths, params)
    jax.block_until_ready((outputs, h_f, c_f))

    ref_out, (ref_h, ref_c) = reference_forward(
        inputs, (h0, c0, z0), sequence_lengths, params)

    assert jnp.allclose(outputs, ref_out, atol=1e-5, rtol=1e-5)
    assert jnp.allclose(h_f, ref_h, atol=1e-5, rtol=1e-5)
    assert jnp.allclose(c_f, ref_c, atol=1e-5, rtol=1e-5)
    print("KERNEL_OK")
</pallas_src>

<mosaic_0001>
module attributes {stable_mosaic.version = 11 : i64} {
  func.func @ar_lstm_kernel(%arg0: memref<8x8x128xf32, #tpu.memory_space<vmem>>, %arg1: memref<8x8x16xf32, #tpu.memory_space<vmem>>, %arg2: memref<8x32xf32, #tpu.memory_space<vmem>>, %arg3: memref<8x32xf32, #tpu.memory_space<vmem>>, %arg4: memref<8x16xf32, #tpu.memory_space<vmem>>, %arg5: memref<16x128xf32, #tpu.memory_space<vmem>>, %arg6: memref<32x128xf32, #tpu.memory_space<vmem>>, %arg7: memref<32x16xf32, #tpu.memory_space<vmem>>, %arg8: memref<1x16xf32, #tpu.memory_space<vmem>>, %arg9: memref<8x128xf32, #tpu.memory_space<vmem>>, %arg10: memref<8x32xf32, #tpu.memory_space<vmem>>, %arg11: memref<8x32xf32, #tpu.memory_space<vmem>>) attributes {dimension_semantics = [], scalar_prefetch = 0 : i64, scratch_operands = 0 : i64, tpu.core_type = #tpu.core_type<tc>} {
    %c0 = arith.constant 0 : index
    %c0_0 = arith.constant 0 : index
    %0 = vector.load %arg5[%c0, %c0_0] : memref<16x128xf32, #tpu.memory_space<vmem>>, vector<16x128xf32>
    %c0_1 = arith.constant 0 : index
    %c0_2 = arith.constant 0 : index
    %1 = vector.load %arg6[%c0_1, %c0_2] : memref<32x128xf32, #tpu.memory_space<vmem>>, vector<32x128xf32>
    %c0_3 = arith.constant 0 : index
    %c0_4 = arith.constant 0 : index
    %2 = vector.load %arg7[%c0_3, %c0_4] : memref<32x16xf32, #tpu.memory_space<vmem>>, vector<32x16xf32>
    %c0_5 = arith.constant 0 : index
    %c0_6 = arith.constant 0 : index
    %3 = vector.load %arg8[%c0_5, %c0_6] : memref<1x16xf32, #tpu.memory_space<vmem>>, vector<1x16xf32>
    %c0_7 = arith.constant 0 : index
    %c0_8 = arith.constant 0 : index
    %4 = vector.load %arg2[%c0_7, %c0_8] : memref<8x32xf32, #tpu.memory_space<vmem>>, vector<8x32xf32>
    %c0_9 = arith.constant 0 : index
    %c0_10 = arith.constant 0 : index
    %5 = vector.load %arg3[%c0_9, %c0_10] : memref<8x32xf32, #tpu.memory_space<vmem>>, vector<8x32xf32>
    %c0_11 = arith.constant 0 : index
    %c0_12 = arith.constant 0 : index
    %6 = vector.load %arg4[%c0_11, %c0_12] : memref<8x16xf32, #tpu.memory_space<vmem>>, vector<8x16xf32>
    %c0_13 = arith.constant 0 : index
    %c0_14 = arith.constant 0 : index
    %c0_15 = arith.constant 0 : index
    %7 = vector.load %arg0[%c0_13, %c0_14, %c0_15] : memref<8x8x128xf32, #tpu.memory_space<vmem>>, vector<1x8x128xf32>
    %8 = vector.shape_cast %7 : vector<1x8x128xf32> to vector<8x128xf32>
    %cst = arith.constant dense<0.000000e+00> : vector<8x128xf32>
    %9 = tpu.matmul %4, %1, %cst {dimension_numbers = #tpu.dot_dimension_numbers<[1], [0], [0], [1], [0, 0, 1, 1], [], []>} : vector<8x32xf32>, vector<32x128xf32>, vector<8x128xf32> -> vector<8x128xf32>
    %10 = arith.addf %8, %9 : vector<8x128xf32>
    %cst_16 = arith.constant dense<0.000000e+00> : vector<8x128xf32>
    %11 = tpu.matmul %6, %0, %cst_16 {dimension_numbers = #tpu.dot_dimension_numbers<[1], [0], [0], [1], [0, 0, 1, 1], [], []>} : vector<8x16xf32>, vector<16x128xf32>, vector<8x128xf32> -> vector<8x128xf32>
    %12 = arith.addf %10, %11 : vector<8x128xf32>
    %13 = math.tanh %12 : vector<8x128xf32>
    %14 = vector.extract_strided_slice %13 {offsets = [0, 0], sizes = [8, 32], strides = [1, 1]} : vector<8x128xf32> to vector<8x32xf32>
    %cst_17 = arith.constant 1.000000e+00 : f32
    %15 = vector.broadcast %cst_17 : f32 to vector<8x32xf32>
    %16 = arith.addf %14, %15 : vector<8x32xf32>
    %cst_18 = arith.constant 5.000000e-01 : f32
    %17 = vector.broadcast %cst_18 : f32 to vector<8x32xf32>
    %18 = arith.mulf %17, %16 : vector<8x32xf32>
    %19 = vector.extract_strided_slice %13 {offsets = [0, 32], sizes = [8, 32], strides = [1, 1]} : vector<8x128xf32> to vector<8x32xf32>
    %cst_19 = arith.constant 1.000000e+00 : f32
    %20 = vector.broadcast %cst_19 : f32 to vector<8x32xf32>
    %21 = arith.addf %19, %20 : vector<8x32xf32>
    %cst_20 = arith.constant 5.000000e-01 : f32
    %22 = vector.broadcast %cst_20 : f32 to vector<8x32xf32>
    %23 = arith.mulf %22, %21 : vector<8x32xf32>
    %24 = vector.extract_strided_slice %13 {offsets = [0, 64], sizes = [8, 32], strides = [1, 1]} : vector<8x128xf32> to vector<8x32xf32>
    %25 = vector.extract_strided_slice %13 {offsets = [0, 96], sizes = [8, 32], strides = [1, 1]} : vector<8x128xf32> to vector<8x32xf32>
    %cst_21 = arith.constant 1.000000e+00 : f32
    %26 = vector.broadcast %cst_21 : f32 to vector<8x32xf32>
    %27 = arith.addf %25, %26 : vector<8x32xf32>
    %cst_22 = arith.constant 5.000000e-01 : f32
    %28 = vector.broadcast %cst_22 : f32 to vector<8x32xf32>
    %29 = arith.mulf %28, %27 : vector<8x32xf32>
    %30 = arith.mulf %23, %5 : vector<8x32xf32>
    %31 = arith.mulf %18, %24 : vector<8x32xf32>
    %32 = arith.addf %30, %31 : vector<8x32xf32>
    %33 = math.tanh %32 : vector<8x32xf32>
    %34 = arith.mulf %29, %33 : vector<8x32xf32>
    %cst_23 = arith.constant dense<0.000000e+00> : vector<8x16xf32>
    %35 = tpu.matmul %34, %2, %cst_23 {dimension_numbers = #tpu.dot_dimension_numbers<[1], [0], [0], [1], [0, 0, 1, 1], [], []>} : vector<8x32xf32>, vector<32x16xf32>, vector<8x16xf32> -> vector<8x16xf32>
    %36 = vector.broadcast %3 : vector<1x16xf32> to vector<8x16xf32>
    %37 = arith.addf %35, %36 : vector<8x16xf32>
    %38 = math.tanh %37 : vector<8x16xf32>
    %c0_24 = arith.constant 0 : index
    %c0_25 = arith.constant 0 : index
    %c0_26 = arith.constant 0 : index
    %39 = vector.load %arg1[%c0_24, %c0_25, %c0_26] : memref<8x8x16xf32, #tpu.memory_space<vmem>>, vector<1x8x16xf32>
    %40 = vector.shape_cast %39 : vector<1x8x16xf32> to vector<8x16xf32>
    %41 = arith.mulf %38, %40 : vector<8x16xf32>
    %c1 = arith.constant 1 : index
    %c0_27 = arith.constant 0 : index
    %c0_28 = arith.constant 0 : index
    %42 = vector.load %arg0[%c1, %c0_27, %c0_28] : memref<8x8x128xf32, #tpu.memory_space<vmem>>, vector<1x8x128xf32>
    %43 = vector.shape_cast %42 : vector<1x8x128xf32> to vector<8x128xf32>
    %cst_29 = arith.constant dense<0.000000e+00> : vector<8x128xf32>
    %44 = tpu.matmul %34, %1, %cst_29 {dimension_numbers = #tpu.dot_dimension_numbers<[1], [0], [0], [1], [0, 0, 1, 1], [], []>} : vector<8x32xf32>, vector<32x128xf32>, vector<8x128xf32> -> vector<8x128xf32>
    %45 = arith.addf %43, %44 : vector<8x128xf32>
    %cst_30 = arith.constant dense<0.000000e+00> : vector<8x128xf32>
    %46 = tpu.matmul %41, %0, %cst_30 {dimension_numbers = #tpu.dot_dimension_numbers<[1], [0], [0], [1], [0, 0, 1, 1], [], []>} : vector<8x16xf32>, vector<16x128xf32>, vector<8x128xf32> -> vector<8x128xf32>
    %47 = arith.addf %45, %46 : vector<8x128xf32>
    %48 = math.tanh %47 : vector<8x128xf32>
    %49 = vector.extract_strided_slice %48 {offsets = [0, 0], sizes = [8, 32], strides = [1, 1]} : vector<8x128xf32> to vector<8x32xf32>
    %cst_31 = arith.constant 1.000000e+00 : f32
    %50 = vector.broadcast %cst_31 : f32 to vector<8x32xf32>
    %51 = arith.addf %49, %50 : vector<8x32xf32>
    %cst_32 = arith.constant 5.000000e-01 : f32
    %52 = vector.broadcast %cst_32 : f32 to vector<8x32xf32>
    %53 = arith.mulf %52, %51 : vector<8x32xf32>
    %54 = vector.extract_strided_slice %48 {offsets = [0, 32], sizes = [8, 32], strides = [1, 1]} : vector<8x128xf32> to vector<8x32xf32>
    %cst_33 = arith.constant 1.000000e+00 : f32
    %55 = vector.broadcast %cst_33 : f32 to vector<8x32xf32>
    %56 = arith.addf %54, %55 : vector<8x32xf32>
    %cst_34 = arith.constant 5.000000e-01 : f32
    %57 = vector.broadcast %cst_34 : f32 to vector<8x32xf32>
    %58 = arith.mulf %57, %56 : vector<8x32xf32>
    %59 = vector.extract_strided_slice %48 {offsets = [0, 64], sizes = [8, 32], strides = [1, 1]} : vector<8x128xf32> to vector<8x32xf32>
    %60 = vector.extract_strided_slice %48 {offsets = [0, 96], sizes = [8, 32], strides = [1, 1]} : vector<8x128xf32> to vector<8x32xf32>
    %cst_35 = arith.constant 1.000000e+00 : f32
    %61 = vector.broadcast %cst_35 : f32 to vector<8x32xf32>
    %62 = arith.addf %60, %61 : vector<8x32xf32>
    %cst_36 = arith.constant 5.000000e-01 : f32
    %63 = vector.broadcast %cst_36 : f32 to vector<8x32xf32>
    %64 = arith.mulf %63, %62 : vector<8x32xf32>
    %65 = arith.mulf %58, %32 : vector<8x32xf32>
    %66 = arith.mulf %53, %59 : vector<8x32xf32>
    %67 = arith.addf %65, %66 : vector<8x32xf32>
    %68 = math.tanh %67 : vector<8x32xf32>
    %69 = arith.mulf %64, %68 : vector<8x32xf32>
    %cst_37 = arith.constant dense<0.000000e+00> : vector<8x16xf32>
    %70 = tpu.matmul %69, %2, %cst_37 {dimension_numbers = #tpu.dot_dimension_numbers<[1], [0], [0], [1], [0, 0, 1, 1], [], []>} : vector<8x32xf32>, vector<32x16xf32>, vector<8x16xf32> -> vector<8x16xf32>
    %71 = vector.broadcast %3 : vector<1x16xf32> to vector<8x16xf32>
    %72 = arith.addf %70, %71 : vector<8x16xf32>
    %73 = math.tanh %72 : vector<8x16xf32>
    %c1_38 = arith.constant 1 : index
    %c0_39 = arith.constant 0 : index
    %c0_40 = arith.constant 0 : index
    %74 = vector.load %arg1[%c1_38, %c0_39, %c0_40] : memref<8x8x16xf32, #tpu.memory_space<vmem>>, vector<1x8x16xf32>
    %75 = vector.shape_cast %74 : vector<1x8x16xf32> to vector<8x16xf32>
    %76 = arith.mulf %73, %75 : vector<8x16xf32>
    %c2 = arith.constant 2 : index
    %c0_41 = arith.constant 0 : index
    %c0_42 = arith.constant 0 : index
    %77 = vector.load %arg0[%c2, %c0_41, %c0_42] : memref<8x8x128xf32, #tpu.memory_space<vmem>>, vector<1x8x128xf32>
    %78 = vector.shape_cast %77 : vector<1x8x128xf32> to vector<8x128xf32>
    %cst_43 = arith.constant dense<0.000000e+00> : vector<8x128xf32>
    %79 = tpu.matmul %69, %1, %cst_43 {dimension_numbers = #tpu.dot_dimension_numbers<[1], [0], [0], [1], [0, 0, 1, 1], [], []>} : vector<8x32xf32>, vector<32x128xf32>, vector<8x128xf32> -> vector<8x128xf32>
    %80 = arith.addf %78, %79 : vector<8x128xf32>
    %cst_44 = arith.constant dense<0.000000e+00> : vector<8x128xf32>
    %81 = tpu.matmul %76, %0, %cst_44 {dimension_numbers = #tpu.dot_dimension_numbers<[1], [0], [0], [1], [0, 0, 1, 1], [], []>} : vector<8x16xf32>, vector<16x128xf32>, vector<8x128xf32> -> vector<8x128xf32>
    %82 = arith.addf %80, %81 : vector<8x128xf32>
    %83 = math.tanh %82 : vector<8x128xf32>
    %84 = vector.extract_strided_slice %83 {offsets = [0, 0], sizes = [8, 32], strides = [1, 1]} : vector<8x128xf32> to vector<8x32xf32>
    %cst_45 = arith.constant 1.000000e+00 : f32
    %85 = vector.broadcast %cst_45 : f32 to vector<8x32xf32>
    %86 = arith.addf %84, %85 : vector<8x32xf32>
    %cst_46 = arith.constant 5.000000e-01 : f32
    %87 = vector.broadcast %cst_46 : f32 to vector<8x32xf32>
    %88 = arith.mulf %87, %86 : vector<8x32xf32>
    %89 = vector.extract_strided_slice %83 {offsets = [0, 32], sizes = [8, 32], strides = [1, 1]} : vector<8x128xf32> to vector<8x32xf32>
    %cst_47 = arith.constant 1.000000e+00 : f32
    %90 = vector.broadcast %cst_47 : f32 to vector<8x32xf32>
    %91 = arith.addf %89, %90 : vector<8x32xf32>
    %cst_48 = arith.constant 5.000000e-01 : f32
    %92 = vector.broadcast %cst_48 : f32 to vector<8x32xf32>
    %93 = arith.mulf %92, %91 : vector<8x32xf32>
    %94 = vector.extract_strided_slice %83 {offsets = [0, 64], sizes = [8, 32], strides = [1, 1]} : vector<8x128xf32> to vector<8x32xf32>
    %95 = vector.extract_strided_slice %83 {offsets = [0, 96], sizes = [8, 32], strides = [1, 1]} : vector<8x128xf32> to vector<8x32xf32>
    %cst_49 = arith.constant 1.000000e+00 : f32
    %96 = vector.broadcast %cst_49 : f32 to vector<8x32xf32>
    %97 = arith.addf %95, %96 : vector<8x32xf32>
    %cst_50 = arith.constant 5.000000e-01 : f32
    %98 = vector.broadcast %cst_50 : f32 to vector<8x32xf32>
    %99 = arith.mulf %98, %97 : vector<8x32xf32>
    %100 = arith.mulf %93, %67 : vector<8x32xf32>
    %101 = arith.mulf %88, %94 : vector<8x32xf32>
    %102 = arith.addf %100, %101 : vector<8x32xf32>
    %103 = math.tanh %102 : vector<8x32xf32>
    %104 = arith.mulf %99, %103 : vector<8x32xf32>
    %cst_51 = arith.constant dense<0.000000e+00> : vector<8x16xf32>
    %105 = tpu.matmul %104, %2, %cst_51 {dimension_numbers = #tpu.dot_dimension_numbers<[1], [0], [0], [1], [0, 0, 1, 1], [], []>} : vector<8x32xf32>, vector<32x16xf32>, vector<8x16xf32> -> vector<8x16xf32>
    %106 = vector.broadcast %3 : vector<1x16xf32> to vector<8x16xf32>
    %107 = arith.addf %105, %106 : vector<8x16xf32>
    %108 = math.tanh %107 : vector<8x16xf32>
    %c2_52 = arith.constant 2 : index
    %c0_53 = arith.constant 0 : index
    %c0_54 = arith.constant 0 : index
    %109 = vector.load %arg1[%c2_52, %c0_53, %c0_54] : memref<8x8x16xf32, #tpu.memory_space<vmem>>, vector<1x8x16xf32>
    %110 = vector.shape_cast %109 : vector<1x8x16xf32> to vector<8x16xf32>
    %111 = arith.mulf %108, %110 : vector<8x16xf32>
    %c3 = arith.constant 3 : index
    %c0_55 = arith.constant 0 : index
    %c0_56 = arith.constant 0 : index
    %112 = vector.load %arg0[%c3, %c0_55, %c0_56] : memref<8x8x128xf32, #tpu.memory_space<vmem>>, vector<1x8x128xf32>
    %113 = vector.shape_cast %112 : vector<1x8x128xf32> to vector<8x128xf32>
    %cst_57 = arith.constant dense<0.000000e+00> : vector<8x128xf32>
    %114 = tpu.matmul %104, %1, %cst_57 {dimension_numbers = #tpu.dot_dimension_numbers<[1], [0], [0], [1], [0, 0, 1, 1], [], []>} : vector<8x32xf32>, vector<32x128xf32>, vector<8x128xf32> -> vector<8x128xf32>
    %115 = arith.addf %113, %114 : vector<8x128xf32>
    %cst_58 = arith.constant dense<0.000000e+00> : vector<8x128xf32>
    %116 = tpu.matmul %111, %0, %cst_58 {dimension_numbers = #tpu.dot_dimension_numbers<[1], [0], [0], [1], [0, 0, 1, 1], [], []>} : vector<8x16xf32>, vector<16x128xf32>, vector<8x128xf32> -> vector<8x128xf32>
    %117 = arith.addf %115, %116 : vector<8x128xf32>
    %118 = math.tanh %117 : vector<8x128xf32>
    %119 = vector.extract_strided_slice %118 {offsets = [0, 0], sizes = [8, 32], strides = [1, 1]} : vector<8x128xf32> to vector<8x32xf32>
    %cst_59 = arith.constant 1.000000e+00 : f32
    %120 = vector.broadcast %cst_59 : f32 to vector<8x32xf32>
    %121 = arith.addf %119, %120 : vector<8x32xf32>
    %cst_60 = arith.constant 5.000000e-01 : f32
    %122 = vector.broadcast %cst_60 : f32 to vector<8x32xf32>
    %123 = arith.mulf %122, %121 : vector<8x32xf32>
    %124 = vector.extract_strided_slice %118 {offsets = [0, 32], sizes = [8, 32], strides = [1, 1]} : vector<8x128xf32> to vector<8x32xf32>
    %cst_61 = arith.constant 1.000000e+00 : f32
    %125 = vector.broadcast %cst_61 : f32 to vector<8x32xf32>
    %126 = arith.addf %124, %125 : vector<8x32xf32>
    %cst_62 = arith.constant 5.000000e-01 : f32
    %127 = vector.broadcast %cst_62 : f32 to vector<8x32xf32>
    %128 = arith.mulf %127, %126 : vector<8x32xf32>
    %129 = vector.extract_strided_slice %118 {offsets = [0, 64], sizes = [8, 32], strides = [1, 1]} : vector<8x128xf32> to vector<8x32xf32>
    %130 = vector.extract_strided_slice %118 {offsets = [0, 96], sizes = [8, 32], strides = [1, 1]} : vector<8x128xf32> to vector<8x32xf32>
    %cst_63 = arith.constant 1.000000e+00 : f32
    %131 = vector.broadcast %cst_63 : f32 to vector<8x32xf32>
    %132 = arith.addf %130, %131 : vector<8x32xf32>
    %cst_64 = arith.constant 5.000000e-01 : f32
    %133 = vector.broadcast %cst_64 : f32 to vector<8x32xf32>
    %134 = arith.mulf %133, %132 : vector<8x32xf32>
    %135 = arith.mulf %128, %102 : vector<8x32xf32>
    %136 = arith.mulf %123, %129 : vector<8x32xf32>
    %137 = arith.addf %135, %136 : vector<8x32xf32>
    %138 = math.tanh %137 : vector<8x32xf32>
    %139 = arith.mulf %134, %138 : vector<8x32xf32>
    %cst_65 = arith.constant dense<0.000000e+00> : vector<8x16xf32>
    %140 = tpu.matmul %139, %2, %cst_65 {dimension_numbers = #tpu.dot_dimension_numbers<[1], [0], [0], [1], [0, 0, 1, 1], [], []>} : vector<8x32xf32>, vector<32x16xf32>, vector<8x16xf32> -> vector<8x16xf32>
    %141 = vector.broadcast %3 : vector<1x16xf32> to vector<8x16xf32>
    %142 = arith.addf %140, %141 : vector<8x16xf32>
    %143 = math.tanh %142 : vector<8x16xf32>
    %c3_66 = arith.constant 3 : index
    %c0_67 = arith.constant 0 : index
    %c0_68 = arith.constant 0 : index
    %144 = vector.load %arg1[%c3_66, %c0_67, %c0_68] : memref<8x8x16xf32, #tpu.memory_space<vmem>>, vector<1x8x16xf32>
    %145 = vector.shape_cast %144 : vector<1x8x16xf32> to vector<8x16xf32>
    %146 = arith.mulf %143, %145 : vector<8x16xf32>
    %c4 = arith.constant 4 : index
    %c0_69 = arith.constant 0 : index
    %c0_70 = arith.constant 0 : index
    %147 = vector.load %arg0[%c4, %c0_69, %c0_70] : memref<8x8x128xf32, #tpu.memory_space<vmem>>, vector<1x8x128xf32>
    %148 = vector.shape_cast %147 : vector<1x8x128xf32> to vector<8x128xf32>
    %cst_71 = arith.constant dense<0.000000e+00> : vector<8x128xf32>
    %149 = tpu.matmul %139, %1, %cst_71 {dimension_numbers = #tpu.dot_dimension_numbers<[1], [0], [0], [1], [0, 0, 1, 1], [], []>} : vector<8x32xf32>, vector<32x128xf32>, vector<8x128xf32> -> vector<8x128xf32>
    %150 = arith.addf %148, %149 : vector<8x128xf32>
    %cst_72 = arith.constant dense<0.000000e+00> : vector<8x128xf32>
    %151 = tpu.matmul %146, %0, %cst_72 {dimension_numbers = #tpu.dot_dimension_numbers<[1], [0], [0], [1], [0, 0, 1, 1], [], []>} : vector<8x16xf32>, vector<16x128xf32>, vector<8x128xf32> -> vector<8x128xf32>
    %152 = arith.addf %150, %151 : vector<8x128xf32>
    %153 = math.tanh %152 : vector<8x128xf32>
    %154 = vector.extract_strided_slice %153 {offsets = [0, 0], sizes = [8, 32], strides = [1, 1]} : vector<8x128xf32> to vector<8x32xf32>
    %cst_73 = arith.constant 1.000000e+00 : f32
    %155 = vector.broadcast %cst_73 : f32 to vector<8x32xf32>
    %156 = arith.addf %154, %155 : vector<8x32xf32>
    %cst_74 = arith.constant 5.000000e-01 : f32
    %157 = vector.broadcast %cst_74 : f32 to vector<8x32xf32>
    %158 = arith.mulf %157, %156 : vector<8x32xf32>
    %159 = vector.extract_strided_slice %153 {offsets = [0, 32], sizes = [8, 32], strides = [1, 1]} : vector<8x128xf32> to vector<8x32xf32>
    %cst_75 = arith.constant 1.000000e+00 : f32
    %160 = vector.broadcast %cst_75 : f32 to vector<8x32xf32>
    %161 = arith.addf %159, %160 : vector<8x32xf32>
    %cst_76 = arith.constant 5.000000e-01 : f32
    %162 = vector.broadcast %cst_76 : f32 to vector<8x32xf32>
    %163 = arith.mulf %162, %161 : vector<8x32xf32>
    %164 = vector.extract_strided_slice %153 {offsets = [0, 64], sizes = [8, 32], strides = [1, 1]} : vector<8x128xf32> to vector<8x32xf32>
    %165 = vector.extract_strided_slice %153 {offsets = [0, 96], sizes = [8, 32], strides = [1, 1]} : vector<8x128xf32> to vector<8x32xf32>
    %cst_77 = arith.constant 1.000000e+00 : f32
    %166 = vector.broadcast %cst_77 : f32 to vector<8x32xf32>
    %167 = arith.addf %165, %166 : vector<8x32xf32>
    %cst_78 = arith.constant 5.000000e-01 : f32
    %168 = vector.broadcast %cst_78 : f32 to vector<8x32xf32>
    %169 = arith.mulf %168, %167 : vector<8x32xf32>
    %170 = arith.mulf %163, %137 : vector<8x32xf32>
    %171 = arith.mulf %158, %164 : vector<8x32xf32>
    %172 = arith.addf %170, %171 : vector<8x32xf32>
    %173 = math.tanh %172 : vector<8x32xf32>
    %174 = arith.mulf %169, %173 : vector<8x32xf32>
    %cst_79 = arith.constant dense<0.000000e+00> : vector<8x16xf32>
    %175 = tpu.matmul %174, %2, %cst_79 {dimension_numbers = #tpu.dot_dimension_numbers<[1], [0], [0], [1], [0, 0, 1, 1], [], []>} : vector<8x32xf32>, vector<32x16xf32>, vector<8x16xf32> -> vector<8x16xf32>
    %176 = vector.broadcast %3 : vector<1x16xf32> to vector<8x16xf32>
    %177 = arith.addf %175, %176 : vector<8x16xf32>
    %178 = math.tanh %177 : vector<8x16xf32>
    %c4_80 = arith.constant 4 : index
    %c0_81 = arith.constant 0 : index
    %c0_82 = arith.constant 0 : index
    %179 = vector.load %arg1[%c4_80, %c0_81, %c0_82] : memref<8x8x16xf32, #tpu.memory_space<vmem>>, vector<1x8x16xf32>
    %180 = vector.shape_cast %179 : vector<1x8x16xf32> to vector<8x16xf32>
    %181 = arith.mulf %178, %180 : vector<8x16xf32>
    %c5 = arith.constant 5 : index
    %c0_83 = arith.constant 0 : index
    %c0_84 = arith.constant 0 : index
    %182 = vector.load %arg0[%c5, %c0_83, %c0_84] : memref<8x8x128xf32, #tpu.memory_space<vmem>>, vector<1x8x128xf32>
    %183 = vector.shape_cast %182 : vector<1x8x128xf32> to vector<8x128xf32>
    %cst_85 = arith.constant dense<0.000000e+00> : vector<8x128xf32>
    %184 = tpu.matmul %174, %1, %cst_85 {dimension_numbers = #tpu.dot_dimension_numbers<[1], [0], [0], [1], [0, 0, 1, 1], [], []>} : vector<8x32xf32>, vector<32x128xf32>, vector<8x128xf32> -> vector<8x128xf32>
    %185 = arith.addf %183, %184 : vector<8x128xf32>
    %cst_86 = arith.constant dense<0.000000e+00> : vector<8x128xf32>
    %186 = tpu.matmul %181, %0, %cst_86 {dimension_numbers = #tpu.dot_dimension_numbers<[1], [0], [0], [1], [0, 0, 1, 1], [], []>} : vector<8x16xf32>, vector<16x128xf32>, vector<8x128xf32> -> vector<8x128xf32>
    %187 = arith.addf %185, %186 : vector<8x128xf32>
    %188 = math.tanh %187 : vector<8x128xf32>
    %189 = vector.extract_strided_slice %188 {offsets = [0, 0], sizes = [8, 32], strides = [1, 1]} : vector<8x128xf32> to vector<8x32xf32>
    %cst_87 = arith.constant 1.000000e+00 : f32
    %190 = vector.broadcast %cst_87 : f32 to vector<8x32xf32>
    %191 = arith.addf %189, %190 : vector<8x32xf32>
    %cst_88 = arith.constant 5.000000e-01 : f32
    %192 = vector.broadcast %cst_88 : f32 to vector<8x32xf32>
    %193 = arith.mulf %192, %191 : vector<8x32xf32>
    %194 = vector.extract_strided_slice %188 {offsets = [0, 32], sizes = [8, 32], strides = [1, 1]} : vector<8x128xf32> to vector<8x32xf32>
    %cst_89 = arith.constant 1.000000e+00 : f32
    %195 = vector.broadcast %cst_89 : f32 to vector<8x32xf32>
    %196 = arith.addf %194, %195 : vector<8x32xf32>
    %cst_90 = arith.constant 5.000000e-01 : f32
    %197 = vector.broadcast %cst_90 : f32 to vector<8x32xf32>
    %198 = arith.mulf %197, %196 : vector<8x32xf32>
    %199 = vector.extract_strided_slice %188 {offsets = [0, 64], sizes = [8, 32], strides = [1, 1]} : vector<8x128xf32> to vector<8x32xf32>
    %200 = vector.extract_strided_slice %188 {offsets = [0, 96], sizes = [8, 32], strides = [1, 1]} : vector<8x128xf32> to vector<8x32xf32>
    %cst_91 = arith.constant 1.000000e+00 : f32
    %201 = vector.broadcast %cst_91 : f32 to vector<8x32xf32>
    %202 = arith.addf %200, %201 : vector<8x32xf32>
    %cst_92 = arith.constant 5.000000e-01 : f32
    %203 = vector.broadcast %cst_92 : f32 to vector<8x32xf32>
    %204 = arith.mulf %203, %202 : vector<8x32xf32>
    %205 = arith.mulf %198, %172 : vector<8x32xf32>
    %206 = arith.mulf %193, %199 : vector<8x32xf32>
    %207 = arith.addf %205, %206 : vector<8x32xf32>
    %208 = math.tanh %207 : vector<8x32xf32>
    %209 = arith.mulf %204, %208 : vector<8x32xf32>
    %cst_93 = arith.constant dense<0.000000e+00> : vector<8x16xf32>
    %210 = tpu.matmul %209, %2, %cst_93 {dimension_numbers = #tpu.dot_dimension_numbers<[1], [0], [0], [1], [0, 0, 1, 1], [], []>} : vector<8x32xf32>, vector<32x16xf32>, vector<8x16xf32> -> vector<8x16xf32>
    %211 = vector.broadcast %3 : vector<1x16xf32> to vector<8x16xf32>
    %212 = arith.addf %210, %211 : vector<8x16xf32>
    %213 = math.tanh %212 : vector<8x16xf32>
    %c5_94 = arith.constant 5 : index
    %c0_95 = arith.constant 0 : index
    %c0_96 = arith.constant 0 : index
    %214 = vector.load %arg1[%c5_94, %c0_95, %c0_96] : memref<8x8x16xf32, #tpu.memory_space<vmem>>, vector<1x8x16xf32>
    %215 = vector.shape_cast %214 : vector<1x8x16xf32> to vector<8x16xf32>
    %216 = arith.mulf %213, %215 : vector<8x16xf32>
    %c6 = arith.constant 6 : index
    %c0_97 = arith.constant 0 : index
    %c0_98 = arith.constant 0 : index
    %217 = vector.load %arg0[%c6, %c0_97, %c0_98] : memref<8x8x128xf32, #tpu.memory_space<vmem>>, vector<1x8x128xf32>
    %218 = vector.shape_cast %217 : vector<1x8x128xf32> to vector<8x128xf32>
    %cst_99 = arith.constant dense<0.000000e+00> : vector<8x128xf32>
    %219 = tpu.matmul %209, %1, %cst_99 {dimension_numbers = #tpu.dot_dimension_numbers<[1], [0], [0], [1], [0, 0, 1, 1], [], []>} : vector<8x32xf32>, vector<32x128xf32>, vector<8x128xf32> -> vector<8x128xf32>
    %220 = arith.addf %218, %219 : vector<8x128xf32>
    %cst_100 = arith.constant dense<0.000000e+00> : vector<8x128xf32>
    %221 = tpu.matmul %216, %0, %cst_100 {dimension_numbers = #tpu.dot_dimension_numbers<[1], [0], [0], [1], [0, 0, 1, 1], [], []>} : vector<8x16xf32>, vector<16x128xf32>, vector<8x128xf32> -> vector<8x128xf32>
    %222 = arith.addf %220, %221 : vector<8x128xf32>
    %223 = math.tanh %222 : vector<8x128xf32>
    %224 = vector.extract_strided_slice %223 {offsets = [0, 0], sizes = [8, 32], strides = [1, 1]} : vector<8x128xf32> to vector<8x32xf32>
    %cst_101 = arith.constant 1.000000e+00 : f32
    %225 = vector.broadcast %cst_101 : f32 to vector<8x32xf32>
    %226 = arith.addf %224, %225 : vector<8x32xf32>
    %cst_102 = arith.constant 5.000000e-01 : f32
    %227 = vector.broadcast %cst_102 : f32 to vector<8x32xf32>
    %228 = arith.mulf %227, %226 : vector<8x32xf32>
    %229 = vector.extract_strided_slice %223 {offsets = [0, 32], sizes = [8, 32], strides = [1, 1]} : vector<8x128xf32> to vector<8x32xf32>
    %cst_103 = arith.constant 1.000000e+00 : f32
    %230 = vector.broadcast %cst_103 : f32 to vector<8x32xf32>
    %231 = arith.addf %229, %230 : vector<8x32xf32>
    %cst_104 = arith.constant 5.000000e-01 : f32
    %232 = vector.broadcast %cst_104 : f32 to vector<8x32xf32>
    %233 = arith.mulf %232, %231 : vector<8x32xf32>
    %234 = vector.extract_strided_slice %223 {offsets = [0, 64], sizes = [8, 32], strides = [1, 1]} : vector<8x128xf32> to vector<8x32xf32>
    %235 = vector.extract_strided_slice %223 {offsets = [0, 96], sizes = [8, 32], strides = [1, 1]} : vector<8x128xf32> to vector<8x32xf32>
    %cst_105 = arith.constant 1.000000e+00 : f32
    %236 = vector.broadcast %cst_105 : f32 to vector<8x32xf32>
    %237 = arith.addf %235, %236 : vector<8x32xf32>
    %cst_106 = arith.constant 5.000000e-01 : f32
    %238 = vector.broadcast %cst_106 : f32 to vector<8x32xf32>
    %239 = arith.mulf %238, %237 : vector<8x32xf32>
    %240 = arith.mulf %233, %207 : vector<8x32xf32>
    %241 = arith.mulf %228, %234 : vector<8x32xf32>
    %242 = arith.addf %240, %241 : vector<8x32xf32>
    %243 = math.tanh %242 : vector<8x32xf32>
    %244 = arith.mulf %239, %243 : vector<8x32xf32>
    %cst_107 = arith.constant dense<0.000000e+00> : vector<8x16xf32>
    %245 = tpu.matmul %244, %2, %cst_107 {dimension_numbers = #tpu.dot_dimension_numbers<[1], [0], [0], [1], [0, 0, 1, 1], [], []>} : vector<8x32xf32>, vector<32x16xf32>, vector<8x16xf32> -> vector<8x16xf32>
    %246 = vector.broadcast %3 : vector<1x16xf32> to vector<8x16xf32>
    %247 = arith.addf %245, %246 : vector<8x16xf32>
    %248 = math.tanh %247 : vector<8x16xf32>
    %c6_108 = arith.constant 6 : index
    %c0_109 = arith.constant 0 : index
    %c0_110 = arith.constant 0 : index
    %249 = vector.load %arg1[%c6_108, %c0_109, %c0_110] : memref<8x8x16xf32, #tpu.memory_space<vmem>>, vector<1x8x16xf32>
    %250 = vector.shape_cast %249 : vector<1x8x16xf32> to vector<8x16xf32>
    %251 = arith.mulf %248, %250 : vector<8x16xf32>
    %c7 = arith.constant 7 : index
    %c0_111 = arith.constant 0 : index
    %c0_112 = arith.constant 0 : index
    %252 = vector.load %arg0[%c7, %c0_111, %c0_112] : memref<8x8x128xf32, #tpu.memory_space<vmem>>, vector<1x8x128xf32>
    %253 = vector.shape_cast %252 : vector<1x8x128xf32> to vector<8x128xf32>
    %cst_113 = arith.constant dense<0.000000e+00> : vector<8x128xf32>
    %254 = tpu.matmul %244, %1, %cst_113 {dimension_numbers = #tpu.dot_dimension_numbers<[1], [0], [0], [1], [0, 0, 1, 1], [], []>} : vector<8x32xf32>, vector<32x128xf32>, vector<8x128xf32> -> vector<8x128xf32>
    %255 = arith.addf %253, %254 : vector<8x128xf32>
    %cst_114 = arith.constant dense<0.000000e+00> : vector<8x128xf32>
    %256 = tpu.matmul %251, %0, %cst_114 {dimension_numbers = #tpu.dot_dimension_numbers<[1], [0], [0], [1], [0, 0, 1, 1], [], []>} : vector<8x16xf32>, vector<16x128xf32>, vector<8x128xf32> -> vector<8x128xf32>
    %257 = arith.addf %255, %256 : vector<8x128xf32>
    %258 = math.tanh %257 : vector<8x128xf32>
    %259 = vector.extract_strided_slice %258 {offsets = [0, 0], sizes = [8, 32], strides = [1, 1]} : vector<8x128xf32> to vector<8x32xf32>
    %cst_115 = arith.constant 1.000000e+00 : f32
    %260 = vector.broadcast %cst_115 : f32 to vector<8x32xf32>
    %261 = arith.addf %259, %260 : vector<8x32xf32>
    %cst_116 = arith.constant 5.000000e-01 : f32
    %262 = vector.broadcast %cst_116 : f32 to vector<8x32xf32>
    %263 = arith.mulf %262, %261 : vector<8x32xf32>
    %264 = vector.extract_strided_slice %258 {offsets = [0, 32], sizes = [8, 32], strides = [1, 1]} : vector<8x128xf32> to vector<8x32xf32>
    %cst_117 = arith.constant 1.000000e+00 : f32
    %265 = vector.broadcast %cst_117 : f32 to vector<8x32xf32>
    %266 = arith.addf %264, %265 : vector<8x32xf32>
    %cst_118 = arith.constant 5.000000e-01 : f32
    %267 = vector.broadcast %cst_118 : f32 to vector<8x32xf32>
    %268 = arith.mulf %267, %266 : vector<8x32xf32>
    %269 = vector.extract_strided_slice %258 {offsets = [0, 64], sizes = [8, 32], strides = [1, 1]} : vector<8x128xf32> to vector<8x32xf32>
    %270 = vector.extract_strided_slice %258 {offsets = [0, 96], sizes = [8, 32], strides = [1, 1]} : vector<8x128xf32> to vector<8x32xf32>
    %cst_119 = arith.constant 1.000000e+00 : f32
    %271 = vector.broadcast %cst_119 : f32 to vector<8x32xf32>
    %272 = arith.addf %270, %271 : vector<8x32xf32>
    %cst_120 = arith.constant 5.000000e-01 : f32
    %273 = vector.broadcast %cst_120 : f32 to vector<8x32xf32>
    %274 = arith.mulf %273, %272 : vector<8x32xf32>
    %275 = arith.mulf %268, %242 : vector<8x32xf32>
    %276 = arith.mulf %263, %269 : vector<8x32xf32>
    %277 = arith.addf %275, %276 : vector<8x32xf32>
    %278 = math.tanh %277 : vector<8x32xf32>
    %279 = arith.mulf %274, %278 : vector<8x32xf32>
    %cst_121 = arith.constant dense<0.000000e+00> : vector<8x16xf32>
    %280 = tpu.matmul %279, %2, %cst_121 {dimension_numbers = #tpu.dot_dimension_numbers<[1], [0], [0], [1], [0, 0, 1, 1], [], []>} : vector<8x32xf32>, vector<32x16xf32>, vector<8x16xf32> -> vector<8x16xf32>
    %281 = vector.broadcast %3 : vector<1x16xf32> to vector<8x16xf32>
    %282 = arith.addf %280, %281 : vector<8x16xf32>
    %283 = math.tanh %282 : vector<8x16xf32>
    %c7_122 = arith.constant 7 : index
    %c0_123 = arith.constant 0 : index
    %c0_124 = arith.constant 0 : index
    %284 = vector.load %arg1[%c7_122, %c0_123, %c0_124] : memref<8x8x16xf32, #tpu.memory_space<vmem>>, vector<1x8x16xf32>
    %285 = vector.shape_cast %284 : vector<1x8x16xf32> to vector<8x16xf32>
    %286 = arith.mulf %283, %285 : vector<8x16xf32>
    %287 = tpu.concatenate %41, %76, %111, %146, %181, %216, %251, %286 in 1 : vector<8x16xf32>, vector<8x16xf32>, vector<8x16xf32>, vector<8x16xf32>, vector<8x16xf32>, vector<8x16xf32>, vector<8x16xf32>, vector<8x16xf32> -> vector<8x128xf32>
    %c0_125 = arith.constant 0 : index
    %c0_126 = arith.constant 0 : index
    %288 = vector.load %arg9[%c0_125, %c0_126] : memref<8x128xf32, #tpu.memory_space<vmem>>, vector<8x128xf32>
    tpu.vector_store %arg9[%c0_125, %c0_126], %287 {strides = array<i32>} : memref<8x128xf32, #tpu.memory_space<vmem>>, vector<8x128xf32>,
    %c0_127 = arith.constant 0 : index
    %c0_128 = arith.constant 0 : index
    %289 = vector.load %arg10[%c0_127, %c0_128] : memref<8x32xf32, #tpu.memory_space<vmem>>, vector<8x32xf32>
    tpu.vector_store %arg10[%c0_127, %c0_128], %279 {strides = array<i32>} : memref<8x32xf32, #tpu.memory_space<vmem>>, vector<8x32xf32>,
    %c0_129 = arith.constant 0 : index
    %c0_130 = arith.constant 0 : index
    %290 = vector.load %arg11[%c0_129, %c0_130] : memref<8x32xf32, #tpu.memory_space<vmem>>, vector<8x32xf32>
    tpu.vector_store %arg11[%c0_129, %c0_130], %277 {strides = array<i32>} : memref<8x32xf32, #tpu.memory_space<vmem>>, vector<8x32xf32>,
    return
  }
}

</mosaic_0001>

<llo_original>
// kernel: tpu_custom_call.1
$region0: #{tpu_custom_call.1}
  #allocation0 [shape = 'u32[]', space=smem, size = 0x4, offset = 0x4, fixed_abs, tag = 'smem constant byte address 0x4 - core index']
  #allocation1 [shape = 'u32[144,128]{1,0:T(1,128)}', space=vmem, size = 0x12000, scoped, tag = 'internal scratch']
  %s0 = inlined_call_operand.hbm [shape: f32[8,8,128], index: 0, kind: input, shape index: {}]
  %s1 = inlined_call_operand.hbm [shape: f32[8,8,16], index: 1, kind: input, shape index: {}]
  %s2 = inlined_call_operand.vmem [shape: f32[8,32], index: 2, kind: input, shape index: {}]
  %s3 = inlined_call_operand.hbm [shape: f32[8,32], index: 3, kind: input, shape index: {}]
  %s4 = inlined_call_operand.hbm [shape: f32[8,16], index: 4, kind: input, shape index: {}]
  %s5 = inlined_call_operand.vmem [shape: f32[16,128], index: 5, kind: input, shape index: {}]
  %s6 = inlined_call_operand.vmem [shape: f32[32,128], index: 6, kind: input, shape index: {}]
  %s7 = inlined_call_operand.vmem [shape: f32[32,16], index: 7, kind: input, shape index: {}]
  %s8 = inlined_call_operand.vmem [shape: f32[1,16], index: 8, kind: input, shape index: {}]
  %s9 = inlined_call_operand.hbm [shape: f32[8,128], index: 9, kind: output, shape index: {0}]
  %s10 = inlined_call_operand.hbm [shape: f32[8,32], index: 10, kind: output, shape index: {1}]
  %s11 = inlined_call_operand.hbm [shape: f32[8,32], index: 11, kind: output, shape index: {2}]
  %12 = xla_tuple %s9, %s10, %s11
  %s13 = sld [smem:[#allocation0]]
  $region78: #{tpu_custom_call.1} parent=0
    _
  %s15 = ssub.s32 1, %s13
  %s16 = scalar_select 0, %s15, %s13
  $region1: #{tpu_custom_call.1} parent=0
    #allocation2 [shape = 'u8[32768]{0}', space=vmem, size = 0x8000, scoped, tag = 'input window, operand 0, single buffered']
    #allocation3 [shape = 's32[1]{0}', space=sflag, size = 0x4, scoped, tag = 'scoped memory for tpu_custom_call.1']
    #allocation4 [shape = 's32[1]{0}', space=sflag, size = 0x4, scoped, tag = 'scoped memory for tpu_custom_call.1']
    #allocation5 [shape = 'u8[32768]{0}', space=vmem, size = 0x8000, scoped, tag = 'input window, operand 1, single buffered']
    #allocation6 [shape = 's32[1]{0}', space=sflag, size = 0x4, scoped, tag = 'scoped memory for tpu_custom_call.1']
    #allocation7 [shape = 'u8[4096]{0}', space=vmem, size = 0x1000, scoped, tag = 'input window, operand 3, single buffered']
    #allocation8 [shape = 'u8[4096]{0}', space=vmem, size = 0x1000, scoped, tag = 'input window, operand 4, single buffered']
    #allocation9 [shape = 's32[1]{0}', space=sflag, size = 0x4, scoped, tag = 'scoped memory for tpu_custom_call.1']
    #allocation10 [shape = 'u8[4096]{0}', space=vmem, size = 0x1000, scoped, tag = 'output window, operand 0, single buffered']
    #allocation11 [shape = 'u8[4096]{0}', space=vmem, size = 0x1000, scoped, tag = 'output window, operand 1, single buffered']
    #allocation12 [shape = 's32[1]{0}', space=sflag, size = 0x4, scoped, tag = 'scoped memory for tpu_custom_call.1']
    #allocation13 [shape = 'u8[4096]{0}', space=vmem, size = 0x1000, scoped, tag = 'output window, operand 2, single buffered']
    %17 = vsyncpa [#allocation3], 0
    %18 = vsyncpa [#allocation6], 0
    %19 = vsyncpa [#allocation9], 0
    %20 = vsyncpa [#allocation4], 0
    %21 = vsyncpa [#allocation12], 0
    // Predicated region
    $region2: #{tpu_custom_call.1} parent=1 // pred_check
      _
    $region3: #{tpu_custom_call.1} parent=1 // pred_check_branch
      %23 = sbr.rel (0) target = $region5
    $region4: #{tpu_custom_call.1} parent=1 // pred_region
      %s25 = ssub.s32 1024, 1024
      %26 = vsyncadd [#allocation3], %s25
      %s27 = sshll.u32 [#allocation2], 4
      %s28 = int_to_ptr.vmem [resolvable:$true] %s27
      %33 = dma.hbm_to_vmem [thread:$0]  %s0, 1024, %s28, [#allocation3], 128, 128, 8
    $region5: #{tpu_custom_call.1} parent=1 // pred_fallthru
      _
    // Predicated region
    $region6: #{tpu_custom_call.1} parent=1 // pred_check
      _
    $region7: #{tpu_custom_call.1} parent=1 // pred_check_branch
      %35 = sbr.rel (0) target = $region9
    $region8: #{tpu_custom_call.1} parent=1 // pred_region
      %s37 = ssub.s32 1024, 1024
      %38 = vsyncadd [#allocation6], %s37
      %s39 = sshll.u32 [#allocation5], 4
      %s40 = int_to_ptr.vmem [resolvable:$true] %s39
      %45 = dma.hbm_to_vmem [thread:$0]  %s1, 1024, %s40, [#allocation6], 128, 128, 8
    $region9: #{tpu_custom_call.1} parent=1 // pred_fallthru
      _
    // Predicated region
    $region10: #{tpu_custom_call.1} parent=1 // pred_check
      _
    $region11: #{tpu_custom_call.1} parent=1 // pred_check_branch
      %47 = sbr.rel (0) target = $region13
    $region12: #{tpu_custom_call.1} parent=1 // pred_region
      _
    $region13: #{tpu_custom_call.1} parent=1 // pred_fallthru
      _
    // Predicated region
    $region14: #{tpu_custom_call.1} parent=1 // pred_check
      _
    $region15: #{tpu_custom_call.1} parent=1 // pred_check_branch
      %49 = sbr.rel (0) target = $region17
    $region16: #{tpu_custom_call.1} parent=1 // pred_region
      %s51 = ssub.s32 128, 128
      %52 = vsyncadd [#allocation6], %s51
      %s54 = sshll.u32 [#allocation7], 4
      %s55 = int_to_ptr.vmem [resolvable:$true] %s54
      %57 = dma.hbm_to_vmem [thread:$0]  %s3, 128, %s55, [#allocation6]
    $region17: #{tpu_custom_call.1} parent=1 // pred_fallthru
      _
    // Predicated region
    $region18: #{tpu_custom_call.1} parent=1 // pred_check
      _
    $region19: #{tpu_custom_call.1} parent=1 // pred_check_branch
      %59 = sbr.rel (0) target = $region21
    $region20: #{tpu_custom_call.1} parent=1 // pred_region
      %s61 = ssub.s32 128, 128
      %62 = vsyncadd [#allocation9], %s61
      %s64 = sshll.u32 [#allocation8], 4
      %s65 = int_to_ptr.vmem [resolvable:$true] %s64
      %67 = dma.hbm_to_vmem [thread:$0]  %s4, 128, %s65, [#allocation9]
    $region21: #{tpu_custom_call.1} parent=1 // pred_fallthru
      _
    // Predicated region
    $region22: #{tpu_custom_call.1} parent=1 // pred_check
      _
    $region23: #{tpu_custom_call.1} parent=1 // pred_check_branch
      %69 = sbr.rel (0) target = $region25
    $region24: #{tpu_custom_call.1} parent=1 // pred_region
      _
    $region25: #{tpu_custom_call.1} parent=1 // pred_fallthru
      _
    // Predicated region
    $region26: #{tpu_custom_call.1} parent=1 // pred_check
      _
    $region27: #{tpu_custom_call.1} parent=1 // pred_check_branch
      %71 = sbr.rel (0) target = $region29
    $region28: #{tpu_custom_call.1} parent=1 // pred_region
      _
    $region29: #{tpu_custom_call.1} parent=1 // pred_fallthru
      _
    // Predicated region
    $region30: #{tpu_custom_call.1} parent=1 // pred_check
      _
    $region31: #{tpu_custom_call.1} parent=1 // pred_check_branch
      %73 = sbr.rel (0) target = $region33
    $region32: #{tpu_custom_call.1} parent=1 // pred_region
      _
    $region33: #{tpu_custom_call.1} parent=1 // pred_fallthru
      _
    // Predicated region
    $region34: #{tpu_custom_call.1} parent=1 // pred_check
      _
    $region35: #{tpu_custom_call.1} parent=1 // pred_check_branch
      %75 = sbr.rel (0) target = $region37
    $region36: #{tpu_custom_call.1} parent=1 // pred_region
      _
    $region37: #{tpu_custom_call.1} parent=1 // pred_fallthru
      _
    // Predicated region
    $region38: #{tpu_custom_call.1} parent=1 // pred_check
      _
    $region39: #{tpu_custom_call.1} parent=1 // pred_check_branch
      %77 = sbr.rel (0) target = $region41
    $region40: #{tpu_custom_call.1} parent=1 // pred_region
      %78 = dma.done [#allocation3], 1024
    $region41: #{tpu_custom_call.1} parent=1 // pred_fallthru
      _
    // Predicated region
    $region42: #{tpu_custom_call.1} parent=1 // pred_check
      _
    $region43: #{tpu_custom_call.1} parent=1 // pred_check_branch
      %80 = sbr.rel (0) target = $region45
    $region44: #{tpu_custom_call.1} parent=1 // pred_region
      %81 = dma.done [#allocation6], 1024
    $region45: #{tpu_custom_call.1} parent=1 // pred_fallthru
      _
    // Predicated region
    $region46: #{tpu_custom_call.1} parent=1 // pred_check
      _
    $region47: #{tpu_custom_call.1} parent=1 // pred_check_branch
      %83 = sbr.rel (0) target = $region49
    $region48: #{tpu_custom_call.1} parent=1 // pred_region
      %84 = dma.done [#allocation6], 128
    $region49: #{tpu_custom_call.1} parent=1 // pred_fallthru
      _
    // Predicated region
    $region50: #{tpu_custom_call.1} parent=1 // pred_check
      _
    $region51: #{tpu_custom_call.1} parent=1 // pred_check_branch
      %86 = sbr.rel (0) target = $region53
    $region52: #{tpu_custom_call.1} parent=1 // pred_region
      %87 = dma.done [#allocation9], 128
    $region53: #{tpu_custom_call.1} parent=1 // pred_fallthru
      _
    %v88 = vld [vmem:[%s5] sm:$0xff]
    %v89 = vld [vmem:[%s5 + $0x8] sm:$0xff]
    %v90 = vld [vmem:[%s6] sm:$0xff]
    %v91 = vld [vmem:[%s6 + $0x8] sm:$0xff]
    %v92 = vld [vmem:[%s6 + $0x10] sm:$0xff]
    %v93 = vld [vmem:[%s6 + $0x18] sm:$0xff]
    %v94 = vld [vmem:[%s7] sm:$0xff]
    %v95 = vld [vmem:[%s7 + $0x8] sm:$0xff]
    %v96 = vld [vmem:[%s7 + $0x10] sm:$0xff]
    %v97 = vld [vmem:[%s7 + $0x18] sm:$0xff]
    %v98 = vld [vmem:[%s8] sm:$0x1]
    %v99 = vld [vmem:[%s2] sm:$0xff]
    %v100 = vld [vmem:[#allocation7] sm:$0xff]
    %v101 = vld [vmem:[#allocation8] sm:$0xff]
    %v102 = vld [vmem:[#allocation2] sm:$0xff]
    %vm103 = vcmask 261120
    %v105 = vsel %vm103, %v99, 0
    %107 = vmatprep.subr.mxu0 0.0
    %108 = vmatpush1.msra.mxu0 %v90
    %109 = vmatprep.subr.mxu0 0.0
    %110 = vmatpush1.msra.mxu0 %v91
    %111 = vmatprep.subr.mxu0 0.0
    %112 = vmatpush1.msra.mxu0 %v92
    %113 = vmatprep.subr.mxu0 0.0
    %114 = vmatpush1.msra.mxu0 %v93
    %115 = vmatprep.subr.mxu0 0.0
    %116 = vmatpush1.msra.mxu0 0.0
    %117 = vmatprep.subr.mxu0 0.0
    %118 = vmatpush1.msra.mxu0 0.0
    %119 = vmatprep.subr.mxu0 0.0
    %120 = vmatpush1.msra.mxu0 0.0
    %121 = vmatprep.subr.mxu0 0.0
    %122 = vmatpush1.msra.mxu0 0.0
    %123 = vmatprep.subr.mxu0 0.0
    %124 = vmatpush1.msra.mxu0 0.0
    %125 = vmatprep.subr.mxu0 0.0
    %126 = vmatpush1.msra.mxu0 0.0
    %127 = vmatprep.subr.mxu0 0.0
    %128 = vmatpush1.msra.mxu0 0.0
    %129 = vmatprep.subr.mxu0 0.0
    %130 = vmatpush1.msra.mxu0 0.0
    %131 = vmatprep.subr.mxu0 0.0
    %132 = vmatpush1.msra.mxu0 0.0
    %133 = vmatprep.subr.mxu0 0.0
    %134 = vmatpush1.msra.mxu0 0.0
    %135 = vmatprep.subr.mxu0 0.0
    %136 = vmatpush1.msra.mxu0 0.0
    %137 = vmatprep.subr.mxu0 0.0
    %138 = vmatpush1.msra.mxu0 0.0
    %139 = vmatprep.subr.mxu0 0.0
    %140 = vmatpush1.msra.mxu0 0.0
    %141 = vmatprep.subr.mxu0 0.0
    %142 = vmatpush1.msra.mxu0 0.0
    %143 = vmatprep.subr.mxu0 0.0
    %144 = vmatpush1.msra.mxu0 0.0
    %145 = vmatprep.subr.mxu0 0.0
    %146 = vmatpush1.msra.mxu0 0.0
    %147 = vmatprep.subr.mxu0 0.0
    %148 = vmatpush1.msra.mxu0 0.0
    %149 = vmatprep.subr.mxu0 0.0
    %150 = vmatpush1.msra.mxu0 0.0
    %151 = vmatprep.subr.mxu0 0.0
    %152 = vmatpush1.msra.mxu0 0.0
    %153 = vmatprep.subr.mxu0 0.0
    %154 = vmatpush1.msra.mxu0 0.0
    %155 = vmatprep.subr.mxu0 0.0
    %156 = vmatpush1.msra.mxu0 0.0
    %157 = vmatprep.subr.mxu0 0.0
    %158 = vmatpush1.msra.mxu0 0.0
    %159 = vmatprep.subr.mxu0 0.0
    %160 = vmatpush1.msra.mxu0 0.0
    %161 = vmatprep.subr.mxu0 0.0
    %162 = vmatpush1.msra.mxu0 0.0
    %163 = vmatprep.subr.mxu0 0.0
    %164 = vmatpush1.msra.mxu0 0.0
    %165 = vmatprep.subr.mxu0 0.0
    %166 = vmatpush1.msra.mxu0 0.0
    %167 = vmatprep.subr.mxu0 0.0
    %168 = vmatpush1.msra.mxu0 0.0
    %169 = vmatprep.subr.mxu0 0.0
    %170 = vmatpush1.msra.mxu0 0.0
    %171 = vmatprep.mubr.f32.mxu0 0.0
    %172 = vmatmul.mubr.f32.gmra.mrb[0].mxu0 %v105
    %v173 = vpop.f32.mrb[0].mxu0
    %v174 = vadd.f32 0.0, %v173
    %v175 = vpop.f32.mrb[0].mxu0
    %176 = vdwg.mxu0
    %v177 = vadd.f32 %v102, %v174
    %vm178 = vcmask 130048
    %v180 = vsel %vm178, %v101, 0
    %182 = vmatprep.subr.mxu0 0.0
    %183 = vmatpush1.msra.mxu0 %v88
    %184 = vmatprep.subr.mxu0 0.0
    %185 = vmatpush1.msra.mxu0 %v89
    %186 = vmatprep.subr.mxu0 0.0
    %187 = vmatpush1.msra.mxu0 0.0
    %188 = vmatprep.subr.mxu0 0.0
    %189 = vmatpush1.msra.mxu0 0.0
    %190 = vmatprep.subr.mxu0 0.0
    %191 = vmatpush1.msra.mxu0 0.0
    %192 = vmatprep.subr.mxu0 0.0
    %193 = vmatpush1.msra.mxu0 0.0
    %194 = vmatprep.subr.mxu0 0.0
    %195 = vmatpush1.msra.mxu0 0.0
    %196 = vmatprep.subr.mxu0 0.0
    %197 = vmatpush1.msra.mxu0 0.0
    %198 = vmatprep.subr.mxu0 0.0
    %199 = vmatpush1.msra.mxu0 0.0
    %200 = vmatprep.subr.mxu0 0.0
    %201 = vmatpush1.msra.mxu0 0.0
    %202 = vmatprep.subr.mxu0 0.0
    %203 = vmatpush1.msra.mxu0 0.0
    %204 = vmatprep.subr.mxu0 0.0
    %205 = vmatpush1.msra.mxu0 0.0
    %206 = vmatprep.subr.mxu0 0.0
    %207 = vmatpush1.msra.mxu0 0.0
    %208 = vmatprep.subr.mxu0 0.0
    %209 = vmatpush1.msra.mxu0 0.0
    %210 = vmatprep.subr.mxu0 0.0
    %211 = vmatpush1.msra.mxu0 0.0
    %212 = vmatprep.subr.mxu0 0.0
    %213 = vmatpush1.msra.mxu0 0.0
    %214 = vmatprep.subr.mxu0 0.0
    %215 = vmatpush1.msra.mxu0 0.0
    %216 = vmatprep.subr.mxu0 0.0
    %217 = vmatpush1.msra.mxu0 0.0
    %218 = vmatprep.subr.mxu0 0.0
    %219 = vmatpush1.msra.mxu0 0.0
    %220 = vmatprep.subr.mxu0 0.0
    %221 = vmatpush1.msra.mxu0 0.0
    %222 = vmatprep.subr.mxu0 0.0
    %223 = vmatpush1.msra.mxu0 0.0
    %224 = vmatprep.subr.mxu0 0.0
    %225 = vmatpush1.msra.mxu0 0.0
    %226 = vmatprep.subr.mxu0 0.0
    %227 = vmatpush1.msra.mxu0 0.0
    %228 = vmatprep.subr.mxu0 0.0
    %229 = vmatpush1.msra.mxu0 0.0
    %230 = vmatprep.subr.mxu0 0.0
    %231 = vmatpush1.msra.mxu0 0.0
    %232 = vmatprep.subr.mxu0 0.0
    %233 = vmatpush1.msra.mxu0 0.0
    %234 = vmatprep.subr.mxu0 0.0
    %235 = vmatpush1.msra.mxu0 0.0
    %236 = vmatprep.subr.mxu0 0.0
    %237 = vmatpush1.msra.mxu0 0.0
    %238 = vmatprep.subr.mxu0 0.0
    %239 = vmatpush1.msra.mxu0 0.0
    %240 = vmatprep.subr.mxu0 0.0
    %241 = vmatpush1.msra.mxu0 0.0
    %242 = vmatprep.subr.mxu0 0.0
    %243 = vmatpush1.msra.mxu0 0.0
    %244 = vmatprep.subr.mxu0 0.0
    %245 = vmatpush1.msra.mxu0 0.0
    %246 = vmatprep.mubr.f32.mxu0 0.0
    %247 = vmatmul.mubr.f32.gmra.mrb[0].mxu0 %v180
    %v248 = vpop.f32.mrb[0].mxu0
    %v249 = vadd.f32 0.0, %v248
    %v250 = vpop.f32.mrb[0].mxu0
    %251 = vdwg.mxu0
    %v252 = vadd.f32 %v177, %v249
    %v253 = vtanh.pop %v252
    %v254 = vadd.f32 %v253, 1.0
    %v255 = vmul.f32 %v254, 0.5
    %257 = vrot.lane.b32.xlu0 %v100, 32
    %v258 = vpop.permute.xlu0 %257
    %v260 = vmul.f32 %v255, %v258
    %262 = vrot.lane.b32.xlu0 %v253, 64
    %v263 = vpop.permute.xlu0 %262
    %v265 = vmul.f32 %v255, %v263
    %267 = vrot.lane.b32.xlu0 %v265, 32
    %v268 = vpop.permute.xlu0 %267
    %v270 = vadd.f32 %v260, %v268
    %v271 = vtanh.pop %v270
    %273 = vrot.lane.b32.xlu0 %v271, 64
    %v274 = vpop.permute.xlu0 %273
    %v276 = vmul.f32 %v255, %v274
    %v278 = vlaneseq
    %v279 = vshrl.u32 %v278, 7
    %v280 = vsub.s32 0, %v279
    %v281 = vrot.slane %v98, %v280
    %284 = vrot.lane.b32.xlu0 %v276, 32
    %v285 = vpop.permute.xlu0 %284
    %v286 = vsel %vm103, %v285, 0
    %288 = vmatprep.subr.mxu0 0.0
    %289 = vmatpush1.msra.mxu0 %v94
    %290 = vmatprep.subr.mxu0 0.0
    %291 = vmatpush1.msra.mxu0 %v95
    %292 = vmatprep.subr.mxu0 0.0
    %293 = vmatpush1.msra.mxu0 %v96
    %294 = vmatprep.subr.mxu0 0.0
    %295 = vmatpush1.msra.mxu0 %v97
    %296 = vmatprep.subr.mxu0 0.0
    %297 = vmatpush1.msra.mxu0 0.0
    %298 = vmatprep.subr.mxu0 0.0
    %299 = vmatpush1.msra.mxu0 0.0
    %300 = vmatprep.subr.mxu0 0.0
    %301 = vmatpush1.msra.mxu0 0.0
    %302 = vmatprep.subr.mxu0 0.0
    %303 = vmatpush1.msra.mxu0 0.0
    %304 = vmatprep.subr.mxu0 0.0
    %305 = vmatpush1.msra.mxu0 0.0
    %306 = vmatprep.subr.mxu0 0.0
    %307 = vmatpush1.msra.mxu0 0.0
    %308 = vmatprep.subr.mxu0 0.0
    %309 = vmatpush1.msra.mxu0 0.0
    %310 = vmatprep.subr.mxu0 0.0
    %311 = vmatpush1.msra.mxu0 0.0
    %312 = vmatprep.subr.mxu0 0.0
    %313 = vmatpush1.msra.mxu0 0.0
    %314 = vmatprep.subr.mxu0 0.0
    %315 = vmatpush1.msra.mxu0 0.0
    %316 = vmatprep.subr.mxu0 0.0
    %317 = vmatpush1.msra.mxu0 0.0
    %318 = vmatprep.subr.mxu0 0.0
    %319 = vmatpush1.msra.mxu0 0.0
    %320 = vmatprep.subr.mxu0 0.0
    %321 = vmatpush1.msra.mxu0 0.0
    %322 = vmatprep.subr.mxu0 0.0
    %323 = vmatpush1.msra.mxu0 0.0
    %324 = vmatprep.subr.mxu0 0.0
    %325 = vmatpush1.msra.mxu0 0.0
    %326 = vmatprep.subr.mxu0 0.0
    %327 = vmatpush1.msra.mxu0 0.0
    %328 = vmatprep.subr.mxu0 0.0
    %329 = vmatpush1.msra.mxu0 0.0
    %330 = vmatprep.subr.mxu0 0.0
    %331 = vmatpush1.msra.mxu0 0.0
    %332 = vmatprep.subr.mxu0 0.0
    %333 = vmatpush1.msra.mxu0 0.0
    %334 = vmatprep.subr.mxu0 0.0
    %335 = vmatpush1.msra.mxu0 0.0
    %336 = vmatprep.subr.mxu0 0.0
    %337 = vmatpush1.msra.mxu0 0.0
    %338 = vmatprep.subr.mxu0 0.0
    %339 = vmatpush1.msra.mxu0 0.0
    %340 = vmatprep.subr.mxu0 0.0
    %341 = vmatpush1.msra.mxu0 0.0
    %342 = vmatprep.subr.mxu0 0.0
    %343 = vmatpush1.msra.mxu0 0.0
    %344 = vmatprep.subr.mxu0 0.0
    %345 = vmatpush1.msra.mxu0 0.0
    %346 = vmatprep.subr.mxu0 0.0
    %347 = vmatpush1.msra.mxu0 0.0
    %348 = vmatprep.subr.mxu0 0.0
    %349 = vmatpush1.msra.mxu0 0.0
    %350 = vmatprep.subr.mxu0 0.0
    %351 = vmatpush1.msra.mxu0 0.0
    %352 = vmatprep.mubr.f32.mxu0 0.0
    %353 = vmatmul.mubr.f32.gmra.mrb[0].mxu0 %v286
    %v354 = vpop.f32.mrb[0].mxu0
    %v355 = vadd.f32 %v281, %v354
    %v356 = vpop.f32.mrb[0].mxu0
    %357 = vdwg.mxu0
    %v358 = vtanh.pop %v355
    %v359 = vld [vmem:[#allocation5] sm:$0xff]
    %v360 = vmul.f32 %v358, %v359
    %s361 = scalar_lea.vmem [#allocation2], 8
    %v362 = vld [vmem:[%s361] sm:$0xff]
    %363 = vmatprep.subr.mxu0 0.0
    %364 = vmatpush1.msra.mxu0 %v90
    %365 = vmatprep.subr.mxu0 0.0
    %366 = vmatpush1.msra.mxu0 %v91
    %367 = vmatprep.subr.mxu0 0.0
    %368 = vmatpush1.msra.mxu0 %v92
    %369 = vmatprep.subr.mxu0 0.0
    %370 = vmatpush1.msra.mxu0 %v93
    %371 = vmatprep.subr.mxu0 0.0
    %372 = vmatpush1.msra.mxu0 0.0
    %373 = vmatprep.subr.mxu0 0.0
    %374 = vmatpush1.msra.mxu0 0.0
    %375 = vmatprep.subr.mxu0 0.0
    %376 = vmatpush1.msra.mxu0 0.0
    %377 = vmatprep.subr.mxu0 0.0
    %378 = vmatpush1.msra.mxu0 0.0
    %379 = vmatprep.subr.mxu0 0.0
    %380 = vmatpush1.msra.mxu0 0.0
    %381 = vmatprep.subr.mxu0 0.0
    %382 = vmatpush1.msra.mxu0 0.0
    %383 = vmatprep.subr.mxu0 0.0
    %384 = vmatpush1.msra.mxu0 0.0
    %385 = vmatprep.subr.mxu0 0.0
    %386 = vmatpush1.msra.mxu0 0.0
    %387 = vmatprep.subr.mxu0 0.0
    %388 = vmatpush1.msra.mxu0 0.0
    %389 = vmatprep.subr.mxu0 0.0
    %390 = vmatpush1.msra.mxu0 0.0
    %391 = vmatprep.subr.mxu0 0.0
    %392 = vmatpush1.msra.mxu0 0.0
    %393 = vmatprep.subr.mxu0 0.0
    %394 = vmatpush1.msra.mxu0 0.0
    %395 = vmatprep.subr.mxu0 0.0
    %396 = vmatpush1.msra.mxu0 0.0
    %397 = vmatprep.subr.mxu0 0.0
    %398 = vmatpush1.msra.mxu0 0.0
    %399 = vmatprep.subr.mxu0 0.0
    %400 = vmatpush1.msra.mxu0 0.0
    %401 = vmatprep.subr.mxu0 0.0
    %402 = vmatpush1.msra.mxu0 0.0
    %403 = vmatprep.subr.mxu0 0.0
    %404 = vmatpush1.msra.mxu0 0.0
    %405 = vmatprep.subr.mxu0 0.0
    %406 = vmatpush1.msra.mxu0 0.0
    %407 = vmatprep.subr.mxu0 0.0
    %408 = vmatpush1.msra.mxu0 0.0
    %409 = vmatprep.subr.mxu0 0.0
    %410 = vmatpush1.msra.mxu0 0.0
    %411 = vmatprep.subr.mxu0 0.0
    %412 = vmatpush1.msra.mxu0 0.0
    %413 = vmatprep.subr.mxu0 0.0
    %414 = vmatpush1.msra.mxu0 0.0
    %415 = vmatprep.subr.mxu0 0.0
    %416 = vmatpush1.msra.mxu0 0.0
    %417 = vmatprep.subr.mxu0 0.0
    %418 = vmatpush1.msra.mxu0 0.0
    %419 = vmatprep.subr.mxu0 0.0
    %420 = vmatpush1.msra.mxu0 0.0
    %421 = vmatprep.subr.mxu0 0.0
    %422 = vmatpush1.msra.mxu0 0.0
    %423 = vmatprep.subr.mxu0 0.0
    %424 = vmatpush1.msra.mxu0 0.0
    %425 = vmatprep.subr.mxu0 0.0
    %426 = vmatpush1.msra.mxu0 0.0
    %427 = vmatprep.mubr.f32.mxu0 0.0
    %428 = vmatmul.mubr.f32.gmra.mrb[0].mxu0 %v286
    %v429 = vpop.f32.mrb[0].mxu0
    %v430 = vadd.f32 0.0, %v429
    %v431 = vpop.f32.mrb[0].mxu0
    %432 = vdwg.mxu0
    %v433 = vadd.f32 %v362, %v430
    %v435 = vsel %vm178, %v360, 0
    %437 = vmatprep.subr.mxu0 0.0
    %438 = vmatpush1.msra.mxu0 %v88
    %439 = vmatprep.subr.mxu0 0.0
    %440 = vmatpush1.msra.mxu0 %v89
    %441 = vmatprep.subr.mxu0 0.0
    %442 = vmatpush1.msra.mxu0 0.0
    %443 = vmatprep.subr.mxu0 0.0
    %444 = vmatpush1.msra.mxu0 0.0
    %445 = vmatprep.subr.mxu0 0.0
    %446 = vmatpush1.msra.mxu0 0.0
    %447 = vmatprep.subr.mxu0 0.0
    %448 = vmatpush1.msra.mxu0 0.0
    %449 = vmatprep.subr.mxu0 0.0
    %450 = vmatpush1.msra.mxu0 0.0
    %451 = vmatprep.subr.mxu0 0.0
    %452 = vmatpush1.msra.mxu0 0.0
    %453 = vmatprep.subr.mxu0 0.0
    %454 = vmatpush1.msra.mxu0 0.0
    %455 = vmatprep.subr.mxu0 0.0
    %456 = vmatpush1.msra.mxu0 0.0
    %457 = vmatprep.subr.mxu0 0.0
    %458 = vmatpush1.msra.mxu0 0.0
    %459 = vmatprep.subr.mxu0 0.0
    %460 = vmatpush1.msra.mxu0 0.0
    %461 = vmatprep.subr.mxu0 0.0
    %462 = vmatpush1.msra.mxu0 0.0
    %463 = vmatprep.subr.mxu0 0.0
    %464 = vmatpush1.msra.mxu0 0.0
    %465 = vmatprep.subr.mxu0 0.0
    %466 = vmatpush1.msra.mxu0 0.0
    %467 = vmatprep.subr.mxu0 0.0
    %468 = vmatpush1.msra.mxu0 0.0
    %469 = vmatprep.subr.mxu0 0.0
    %470 = vmatpush1.msra.mxu0 0.0
    %471 = vmatprep.subr.mxu0 0.0
    %472 = vmatpush1.msra.mxu0 0.0
    %473 = vmatprep.subr.mxu0 0.0
    %474 = vmatpush1.msra.mxu0 0.0
    %475 = vmatprep.subr.mxu0 0.0
    %476 = vmatpush1.msra.mxu0 0.0
    %477 = vmatprep.subr.mxu0 0.0
    %478 = vmatpush1.msra.mxu0 0.0
    %479 = vmatprep.subr.mxu0 0.0
    %480 = vmatpush1.msra.mxu0 0.0
    %481 = vmatprep.subr.mxu0 0.0
    %482 = vmatpush1.msra.mxu0 0.0
    %483 = vmatprep.subr.mxu0 0.0
    %484 = vmatpush1.msra.mxu0 0.0
    %485 = vmatprep.subr.mxu0 0.0
    %486 = vmatpush1.msra.mxu0 0.0
    %487 = vmatprep.subr.mxu0 0.0
    %488 = vmatpush1.msra.mxu0 0.0
    %489 = vmatprep.subr.mxu0 0.0
    %490 = vmatpush1.msra.mxu0 0.0
    %491 = vmatprep.subr.mxu0 0.0
    %492 = vmatpush1.msra.mxu0 0.0
    %493 = vmatprep.subr.mxu0 0.0
    %494 = vmatpush1.msra.mxu0 0.0
    %495 = vmatprep.subr.mxu0 0.0
    %496 = vmatpush1.msra.mxu0 0.0
    %497 = vmatprep.subr.mxu0 0.0
    %498 = vmatpush1.msra.mxu0 0.0
    %499 = vmatprep.subr.mxu0 0.0
    %500 = vmatpush1.msra.mxu0 0.0
    %501 = vmatprep.mubr.f32.mxu0 0.0
    %502 = vmatmul.mubr.f32.gmra.mrb[0].mxu0 %v435
    %v503 = vpop.f32.mrb[0].mxu0
    %v504 = vadd.f32 0.0, %v503
    %v505 = vpop.f32.mrb[0].mxu0
    %506 = vdwg.mxu0
    %v507 = vadd.f32 %v433, %v504
    %v508 = vtanh.pop %v507
    %v509 = vadd.f32 %v508, 1.0
    %v510 = vmul.f32 %v509, 0.5
    %v511 = vmul.f32 %v510, %v270
    %513 = vrot.lane.b32.xlu0 %v508, 64
    %v514 = vpop.permute.xlu0 %513
    %v516 = vmul.f32 %v510, %v514
    %518 = vrot.lane.b32.xlu0 %v516, 32
    %v519 = vpop.permute.xlu0 %518
    %v521 = vadd.f32 %v511, %v519
    %v522 = vtanh.pop %v521
    %524 = vrot.lane.b32.xlu0 %v522, 64
    %v525 = vpop.permute.xlu0 %524
    %v527 = vmul.f32 %v510, %v525
    %529 = vrot.lane.b32.xlu0 %v527, 32
    %v530 = vpop.permute.xlu0 %529
    %v531 = vsel %vm103, %v530, 0
    %533 = vmatprep.subr.mxu0 0.0
    %534 = vmatpush1.msra.mxu0 %v94
    %535 = vmatprep.subr.mxu0 0.0
    %536 = vmatpush1.msra.mxu0 %v95
    %537 = vmatprep.subr.mxu0 0.0
    %538 = vmatpush1.msra.mxu0 %v96
    %539 = vmatprep.subr.mxu0 0.0
    %540 = vmatpush1.msra.mxu0 %v97
    %541 = vmatprep.subr.mxu0 0.0
    %542 = vmatpush1.msra.mxu0 0.0
    %543 = vmatprep.subr.mxu0 0.0
    %544 = vmatpush1.msra.mxu0 0.0
    %545 = vmatprep.subr.mxu0 0.0
    %546 = vmatpush1.msra.mxu0 0.0
    %547 = vmatprep.subr.mxu0 0.0
    %548 = vmatpush1.msra.mxu0 0.0
    %549 = vmatprep.subr.mxu0 0.0
    %550 = vmatpush1.msra.mxu0 0.0
    %551 = vmatprep.subr.mxu0 0.0
    %552 = vmatpush1.msra.mxu0 0.0
    %553 = vmatprep.subr.mxu0 0.0
    %554 = vmatpush1.msra.mxu0 0.0
    %555 = vmatprep.subr.mxu0 0.0
    %556 = vmatpush1.msra.mxu0 0.0
    %557 = vmatprep.subr.mxu0 0.0
    %558 = vmatpush1.msra.mxu0 0.0
    %559 = vmatprep.subr.mxu0 0.0
    %560 = vmatpush1.msra.mxu0 0.0
    %561 = vmatprep.subr.mxu0 0.0
    %562 = vmatpush1.msra.mxu0 0.0
    %563 = vmatprep.subr.mxu0 0.0
    %564 = vmatpush1.msra.mxu0 0.0
    %565 = vmatprep.subr.mxu0 0.0
    %566 = vmatpush1.msra.mxu0 0.0
    %567 = vmatprep.subr.mxu0 0.0
    %568 = vmatpush1.msra.mxu0 0.0
    %569 = vmatprep.subr.mxu0 0.0
    %570 = vmatpush1.msra.mxu0 0.0
    %571 = vmatprep.subr.mxu0 0.0
    %572 = vmatpush1.msra.mxu0 0.0
    %573 = vmatprep.subr.mxu0 0.0
    %574 = vmatpush1.msra.mxu0 0.0
    %575 = vmatprep.subr.mxu0 0.0
    %576 = vmatpush1.msra.mxu0 0.0
    %577 = vmatprep.subr.mxu0 0.0
    %578 = vmatpush1.msra.mxu0 0.0
    %579 = vmatprep.subr.mxu0 0.0
    %580 = vmatpush1.msra.mxu0 0.0
    %581 = vmatprep.subr.mxu0 0.0
    %582 = vmatpush1.msra.mxu0 0.0
    %583 = vmatprep.subr.mxu0 0.0
    %584 = vmatpush1.msra.mxu0 0.0
    %585 = vmatprep.subr.mxu0 0.0
    %586 = vmatpush1.msra.mxu0 0.0
    %587 = vmatprep.subr.mxu0 0.0
    %588 = vmatpush1.msra.mxu0 0.0
    %589 = vmatprep.subr.mxu0 0.0
    %590 = vmatpush1.msra.mxu0 0.0
    %591 = vmatprep.subr.mxu0 0.0
    %592 = vmatpush1.msra.mxu0 0.0
    %593 = vmatprep.subr.mxu0 0.0
    %594 = vmatpush1.msra.mxu0 0.0
    %595 = vmatprep.subr.mxu0 0.0
    %596 = vmatpush1.msra.mxu0 0.0
    %597 = vmatprep.mubr.f32.mxu0 0.0
    %598 = vmatmul.mubr.f32.gmra.mrb[0].mxu0 %v531
    %v599 = vpop.f32.mrb[0].mxu0
    %v600 = vadd.f32 %v281, %v599
    %v601 = vpop.f32.mrb[0].mxu0
    %602 = vdwg.mxu0
    %v603 = vtanh.pop %v600
    %s604 = scalar_lea.vmem [#allocation5], 8
    %v605 = vld [vmem:[%s604] sm:$0xff]
    %v606 = vmul.f32 %v603, %v605
    %s607 = scalar_lea.vmem [#allocation2], 16
    %v608 = vld [vmem:[%s607] sm:$0xff]
    %609 = vmatprep.subr.mxu0 0.0
    %610 = vmatpush1.msra.mxu0 %v90
    %611 = vmatprep.subr.mxu0 0.0
    %612 = vmatpush1.msra.mxu0 %v91
    %613 = vmatprep.subr.mxu0 0.0
    %614 = vmatpush1.msra.mxu0 %v92
    %615 = vmatprep.subr.mxu0 0.0
    %616 = vmatpush1.msra.mxu0 %v93
    %617 = vmatprep.subr.mxu0 0.0
    %618 = vmatpush1.msra.mxu0 0.0
    %619 = vmatprep.subr.mxu0 0.0
    %620 = vmatpush1.msra.mxu0 0.0
    %621 = vmatprep.subr.mxu0 0.0
    %622 = vmatpush1.msra.mxu0 0.0
    %623 = vmatprep.subr.mxu0 0.0
    %624 = vmatpush1.msra.mxu0 0.0
    %625 = vmatprep.subr.mxu0 0.0
    %626 = vmatpush1.msra.mxu0 0.0
    %627 = vmatprep.subr.mxu0 0.0
    %628 = vmatpush1.msra.mxu0 0.0
    %629 = vmatprep.subr.mxu0 0.0
    %630 = vmatpush1.msra.mxu0 0.0
    %631 = vmatprep.subr.mxu0 0.0
    %632 = vmatpush1.msra.mxu0 0.0
    %633 = vmatprep.subr.mxu0 0.0
    %634 = vmatpush1.msra.mxu0 0.0
    %635 = vmatprep.subr.mxu0 0.0
    %636 = vmatpush1.msra.mxu0 0.0
    %637 = vmatprep.subr.mxu0 0.0
    %638 = vmatpush1.msra.mxu0 0.0
    %639 = vmatprep.subr.mxu0 0.0
    %640 = vmatpush1.msra.mxu0 0.0
    %641 = vmatprep.subr.mxu0 0.0
    %642 = vmatpush1.msra.mxu0 0.0
    %643 = vmatprep.subr.mxu0 0.0
    %644 = vmatpush1.msra.mxu0 0.0
    %645 = vmatprep.subr.mxu0 0.0
    %646 = vmatpush1.msra.mxu0 0.0
    %647 = vmatprep.subr.mxu0 0.0
    %648 = vmatpush1.msra.mxu0 0.0
    %649 = vmatprep.subr.mxu0 0.0
    %650 = vmatpush1.msra.mxu0 0.0
    %651 = vmatprep.subr.mxu0 0.0
    %652 = vmatpush1.msra.mxu0 0.0
    %653 = vmatprep.subr.mxu0 0.0
    %654 = vmatpush1.msra.mxu0 0.0
    %655 = vmatprep.subr.mxu0 0.0
    %656 = vmatpush1.msra.mxu0 0.0
    %657 = vmatprep.subr.mxu0 0.0
    %658 = vmatpush1.msra.mxu0 0.0
    %659 = vmatprep.subr.mxu0 0.0
    %660 = vmatpush1.msra.mxu0 0.0
    %661 = vmatprep.subr.mxu0 0.0
    %662 = vmatpush1.msra.mxu0 0.0
    %663 = vmatprep.subr.mxu0 0.0
    %664 = vmatpush1.msra.mxu0 0.0
    %665 = vmatprep.subr.mxu0 0.0
    %666 = vmatpush1.msra.mxu0 0.0
    %667 = vmatprep.subr.mxu0 0.0
    %668 = vmatpush1.msra.mxu0 0.0
    %669 = vmatprep.subr.mxu0 0.0
    %670 = vmatpush1.msra.mxu0 0.0
    %671 = vmatprep.subr.mxu0 0.0
    %672 = vmatpush1.msra.mxu0 0.0
    %673 = vmatprep.mubr.f32.mxu0 0.0
    %674 = vmatmul.mubr.f32.gmra.mrb[0].mxu0 %v531
    %v675 = vpop.f32.mrb[0].mxu0
    %v676 = vadd.f32 0.0, %v675
    %v677 = vpop.f32.mrb[0].mxu0
    %678 = vdwg.mxu0
    %v679 = vadd.f32 %v608, %v676
    %v681 = vsel %vm178, %v606, 0
    %683 = vmatprep.subr.mxu0 0.0
    %684 = vmatpush1.msra.mxu0 %v88
    %685 = vmatprep.subr.mxu0 0.0
    %686 = vmatpush1.msra.mxu0 %v89
    %687 = vmatprep.subr.mxu0 0.0
    %688 = vmatpush1.msra.mxu0 0.0
    %689 = vmatprep.subr.mxu0 0.0
    %690 = vmatpush1.msra.mxu0 0.0
    %691 = vmatprep.subr.mxu0 0.0
    %692 = vmatpush1.msra.mxu0 0.0
    %693 = vmatprep.subr.mxu0 0.0
    %694 = vmatpush1.msra.mxu0 0.0
    %695 = vmatprep.subr.mxu0 0.0
    %696 = vmatpush1.msra.mxu0 0.0
    %697 = vmatprep.subr.mxu0 0.0
    %698 = vmatpush1.msra.mxu0 0.0
    %699 = vmatprep.subr.mxu0 0.0
    %700 = vmatpush1.msra.mxu0 0.0
    %701 = vmatprep.subr.mxu0 0.0
    %702 = vmatpush1.msra.mxu0 0.0
    %703 = vmatprep.subr.mxu0 0.0
    %704 = vmatpush1.msra.mxu0 0.0
    %705 = vmatprep.subr.mxu0 0.0
    %706 = vmatpush1.msra.mxu0 0.0
    %707 = vmatprep.subr.mxu0 0.0
    %708 = vmatpush1.msra.mxu0 0.0
    %709 = vmatprep.subr.mxu0 0.0
    %710 = vmatpush1.msra.mxu0 0.0
    %711 = vmatprep.subr.mxu0 0.0
    %712 = vmatpush1.msra.mxu0 0.0
    %713 = vmatprep.subr.mxu0 0.0
    %714 = vmatpush1.msra.mxu0 0.0
    %715 = vmatprep.subr.mxu0 0.0
    %716 = vmatpush1.msra.mxu0 0.0
    %717 = vmatprep.subr.mxu0 0.0
    %718 = vmatpush1.msra.mxu0 0.0
    %719 = vmatprep.subr.mxu0 0.0
    %720 = vmatpush1.msra.mxu0 0.0
    %721 = vmatprep.subr.mxu0 0.0
    %722 = vmatpush1.msra.mxu0 0.0
    %723 = vmatprep.subr.mxu0 0.0
    %724 = vmatpush1.msra.mxu0 0.0
    %725 = vmatprep.subr.mxu0 0.0
    %726 = vmatpush1.msra.mxu0 0.0
    %727 = vmatprep.subr.mxu0 0.0
    %728 = vmatpush1.msra.mxu0 0.0
    %729 = vmatprep.subr.mxu0 0.0
    %730 = vmatpush1.msra.mxu0 0.0
    %731 = vmatprep.subr.mxu0 0.0
    %732 = vmatpush1.msra.mxu0 0.0
    %733 = vmatprep.subr.mxu0 0.0
    %734 = vmatpush1.msra.mxu0 0.0
    %735 = vmatprep.subr.mxu0 0.0
    %736 = vmatpush1.msra.mxu0 0.0
    %737 = vmatprep.subr.mxu0 0.0
    %738 = vmatpush1.msra.mxu0 0.0
    %739 = vmatprep.subr.mxu0 0.0
    %740 = vmatpush1.msra.mxu0 0.0
    %741 = vmatprep.subr.mxu0 0.0
    %742 = vmatpush1.msra.mxu0 0.0
    %743 = vmatprep.subr.mxu0 0.0
    %744 = vmatpush1.msra.mxu0 0.0
    %745 = vmatprep.subr.mxu0 0.0
    %746 = vmatpush1.msra.mxu0 0.0
    %747 = vmatprep.mubr.f32.mxu0 0.0
    %748 = vmatmul.mubr.f32.gmra.mrb[0].mxu0 %v681
    %v749 = vpop.f32.mrb[0].mxu0
    %v750 = vadd.f32 0.0, %v749
    %v751 = vpop.f32.mrb[0].mxu0
    %752 = vdwg.mxu0
    %v753 = vadd.f32 %v679, %v750
    %v754 = vtanh.pop %v753
    %v755 = vadd.f32 %v754, 1.0
    %v756 = vmul.f32 %v755, 0.5
    %v757 = vmul.f32 %v756, %v521
    %759 = vrot.lane.b32.xlu0 %v754, 64
    %v760 = vpop.permute.xlu0 %759
    %v762 = vmul.f32 %v756, %v760
    %764 = vrot.lane.b32.xlu0 %v762, 32
    %v765 = vpop.permute.xlu0 %764
    %v767 = vadd.f32 %v757, %v765
    %v768 = vtanh.pop %v767
    %770 = vrot.lane.b32.xlu0 %v768, 64
    %v771 = vpop.permute.xlu0 %770
    %v773 = vmul.f32 %v756, %v771
    %775 = vrot.lane.b32.xlu0 %v773, 32
    %v776 = vpop.permute.xlu0 %775
    %v777 = vsel %vm103, %v776, 0
    %779 = vmatprep.subr.mxu0 0.0
    %780 = vmatpush1.msra.mxu0 %v94
    %781 = vmatprep.subr.mxu0 0.0
    %782 = vmatpush1.msra.mxu0 %v95
    %783 = vmatprep.subr.mxu0 0.0
    %784 = vmatpush1.msra.mxu0 %v96
    %785 = vmatprep.subr.mxu0 0.0
    %786 = vmatpush1.msra.mxu0 %v97
    %787 = vmatprep.subr.mxu0 0.0
    %788 = vmatpush1.msra.mxu0 0.0
    %789 = vmatprep.subr.mxu0 0.0
    %790 = vmatpush1.msra.mxu0 0.0
    %791 = vmatprep.subr.mxu0 0.0
    %792 = vmatpush1.msra.mxu0 0.0
    %793 = vmatprep.subr.mxu0 0.0
    %794 = vmatpush1.msra.mxu0 0.0
    %795 = vmatprep.subr.mxu0 0.0
    %796 = vmatpush1.msra.mxu0 0.0
    %797 = vmatprep.subr.mxu0 0.0
    %798 = vmatpush1.msra.mxu0 0.0
    %799 = vmatprep.subr.mxu0 0.0
    %800 = vmatpush1.msra.mxu0 0.0
    %801 = vmatprep.subr.mxu0 0.0
    %802 = vmatpush1.msra.mxu0 0.0
    %803 = vmatprep.subr.mxu0 0.0
    %804 = vmatpush1.msra.mxu0 0.0
    %805 = vmatprep.subr.mxu0 0.0
    %806 = vmatpush1.msra.mxu0 0.0
    %807 = vmatprep.subr.mxu0 0.0
    %808 = vmatpush1.msra.mxu0 0.0
    %809 = vmatprep.subr.mxu0 0.0
    %810 = vmatpush1.msra.mxu0 0.0
    %811 = vmatprep.subr.mxu0 0.0
    %812 = vmatpush1.msra.mxu0 0.0
    %813 = vmatprep.subr.mxu0 0.0
    %814 = vmatpush1.msra.mxu0 0.0
    %815 = vmatprep.subr.mxu0 0.0
    %816 = vmatpush1.msra.mxu0 0.0
    %817 = vmatprep.subr.mxu0 0.0
    %818 = vmatpush1.msra.mxu0 0.0
    %819 = vmatprep.subr.mxu0 0.0
    %820 = vmatpush1.msra.mxu0 0.0
    %821 = vmatprep.subr.mxu0 0.0
    %822 = vmatpush1.msra.mxu0 0.0
    %823 = vmatprep.subr.mxu0 0.0
    %824 = vmatpush1.msra.mxu0 0.0
    %825 = vmatprep.subr.mxu0 0.0
    %826 = vmatpush1.msra.mxu0 0.0
    %827 = vmatprep.subr.mxu0 0.0
    %828 = vmatpush1.msra.mxu0 0.0
    %829 = vmatprep.subr.mxu0 0.0
    %830 = vmatpush1.msra.mxu0 0.0
    %831 = vmatprep.subr.mxu0 0.0
    %832 = vmatpush1.msra.mxu0 0.0
    %833 = vmatprep.subr.mxu0 0.0
    %834 = vmatpush1.msra.mxu0 0.0
    %835 = vmatprep.subr.mxu0 0.0
    %836 = vmatpush1.msra.mxu0 0.0
    %837 = vmatprep.subr.mxu0 0.0
    %838 = vmatpush1.msra.mxu0 0.0
    %839 = vmatprep.subr.mxu0 0.0
    %840 = vmatpush1.msra.mxu0 0.0
    %841 = vmatprep.subr.mxu0 0.0
    %842 = vmatpush1.msra.mxu0 0.0
    %843 = vmatprep.mubr.f32.mxu0 0.0
    %844 = vmatmul.mubr.f32.gmra.mrb[0].mxu0 %v777
    %v845 = vpop.f32.mrb[0].mxu0
    %v846 = vadd.f32 %v281, %v845
    %v847 = vpop.f32.mrb[0].mxu0
    %848 = vdwg.mxu0
    %v849 = vtanh.pop %v846
    %s850 = scalar_lea.vmem [#allocation5], 16
    %v851 = vld [vmem:[%s850] sm:$0xff]
    %v852 = vmul.f32 %v849, %v851
    %s853 = scalar_lea.vmem [#allocation2], 24
    %v854 = vld [vmem:[%s853] sm:$0xff]
    %855 = vmatprep.subr.mxu0 0.0
    %856 = vmatpush1.msra.mxu0 %v90
    %857 = vmatprep.subr.mxu0 0.0
    %858 = vmatpush1.msra.mxu0 %v91
    %859 = vmatprep.subr.mxu0 0.0
    %860 = vmatpush1.msra.mxu0 %v92
    %861 = vmatprep.subr.mxu0 0.0
    %862 = vmatpush1.msra.mxu0 %v93
    %863 = vmatprep.subr.mxu0 0.0
    %864 = vmatpush1.msra.mxu0 0.0
    %865 = vmatprep.subr.mxu0 0.0
    %866 = vmatpush1.msra.mxu0 0.0
    %867 = vmatprep.subr.mxu0 0.0
    %868 = vmatpush1.msra.mxu0 0.0
    %869 = vmatprep.subr.mxu0 0.0
    %870 = vmatpush1.msra.mxu0 0.0
    %871 = vmatprep.subr.mxu0 0.0
    %872 = vmatpush1.msra.mxu0 0.0
    %873 = vmatprep.subr.mxu0 0.0
    %874 = vmatpush1.msra.mxu0 0.0
    %875 = vmatprep.subr.mxu0 0.0
    %876 = vmatpush1.msra.mxu0 0.0
    %877 = vmatprep.subr.mxu0 0.0
    %878 = vmatpush1.msra.mxu0 0.0
    %879 = vmatprep.subr.mxu0 0.0
    %880 = vmatpush1.msra.mxu0 0.0
    %881 = vmatprep.subr.mxu0 0.0
    %882 = vmatpush1.msra.mxu0 0.0
    %883 = vmatprep.subr.mxu0 0.0
    %884 = vmatpush1.msra.mxu0 0.0
    %885 = vmatprep.subr.mxu0 0.0
    %886 = vmatpush1.msra.mxu0 0.0
    %887 = vmatprep.subr.mxu0 0.0
    %888 = vmatpush1.msra.mxu0 0.0
    %889 = vmatprep.subr.mxu0 0.0
    %890 = vmatpush1.msra.mxu0 0.0
    %891 = vmatprep.subr.mxu0 0.0
    %892 = vmatpush1.msra.mxu0 0.0
    %893 = vmatprep.subr.mxu0 0.0
    %894 = vmatpush1.msra.mxu0 0.0
    %895 = vmatprep.subr.mxu0 0.0
    %896 = vmatpush1.msra.mxu0 0.0
    %897 = vmatprep.subr.mxu0 0.0
    %898 = vmatpush1.msra.mxu0 0.0
    %899 = vmatprep.subr.mxu0 0.0
    %900 = vmatpush1.msra.mxu0 0.0
    %901 = vmatprep.subr.mxu0 0.0
    %902 = vmatpush1.msra.mxu0 0.0
    %903 = vmatprep.subr.mxu0 0.0
    %904 = vmatpush1.msra.mxu0 0.0
    %905 = vmatprep.subr.mxu0 0.0
    %906 = vmatpush1.msra.mxu0 0.0
    %907 = vmatprep.subr.mxu0 0.0
    %908 = vmatpush1.msra.mxu0 0.0
    %909 = vmatprep.subr.mxu0 0.0
    %910 = vmatpush1.msra.mxu0 0.0
    %911 = vmatprep.subr.mxu0 0.0
    %912 = vmatpush1.msra.mxu0 0.0
    %913 = vmatprep.subr.mxu0 0.0
    %914 = vmatpush1.msra.mxu0 0.0
    %915 = vmatprep.subr.mxu0 0.0
    %916 = vmatpush1.msra.mxu0 0.0
    %917 = vmatprep.subr.mxu0 0.0
    %918 = vmatpush1.msra.mxu0 0.0
    %919 = vmatprep.mubr.f32.mxu0 0.0
    %920 = vmatmul.mubr.f32.gmra.mrb[0].mxu0 %v777
    %v921 = vpop.f32.mrb[0].mxu0
    %v922 = vadd.f32 0.0, %v921
    %v923 = vpop.f32.mrb[0].mxu0
    %924 = vdwg.mxu0
    %v925 = vadd.f32 %v854, %v922
    %v927 = vsel %vm178, %v852, 0
    %929 = vmatprep.subr.mxu0 0.0
    %930 = vmatpush1.msra.mxu0 %v88
    %931 = vmatprep.subr.mxu0 0.0
    %932 = vmatpush1.msra.mxu0 %v89
    %933 = vmatprep.subr.mxu0 0.0
    %934 = vmatpush1.msra.mxu0 0.0
    %935 = vmatprep.subr.mxu0 0.0
    %936 = vmatpush1.msra.mxu0 0.0
    %937 = vmatprep.subr.mxu0 0.0
    %938 = vmatpush1.msra.mxu0 0.0
    %939 = vmatprep.subr.mxu0 0.0
    %940 = vmatpush1.msra.mxu0 0.0
    %941 = vmatprep.subr.mxu0 0.0
    %942 = vmatpush1.msra.mxu0 0.0
    %943 = vmatprep.subr.mxu0 0.0
    %944 = vmatpush1.msra.mxu0 0.0
    %945 = vmatprep.subr.mxu0 0.0
    %946 = vmatpush1.msra.mxu0 0.0
    %947 = vmatprep.subr.mxu0 0.0
    %948 = vmatpush1.msra.mxu0 0.0
    %949 = vmatprep.subr.mxu0 0.0
    %950 = vmatpush1.msra.mxu0 0.0
    %951 = vmatprep.subr.mxu0 0.0
    %952 = vmatpush1.msra.mxu0 0.0
    %953 = vmatprep.subr.mxu0 0.0
    %954 = vmatpush1.msra.mxu0 0.0
    %955 = vmatprep.subr.mxu0 0.0
    %956 = vmatpush1.msra.mxu0 0.0
    %957 = vmatprep.subr.mxu0 0.0
    %958 = vmatpush1.msra.mxu0 0.0
    %959 = vmatprep.subr.mxu0 0.0
    %960 = vmatpush1.msra.mxu0 0.0
    %961 = vmatprep.subr.mxu0 0.0
    %962 = vmatpush1.msra.mxu0 0.0
    %963 = vmatprep.subr.mxu0 0.0
    %964 = vmatpush1.msra.mxu0 0.0
    %965 = vmatprep.subr.mxu0 0.0
    %966 = vmatpush1.msra.mxu0 0.0
    %967 = vmatprep.subr.mxu0 0.0
    %968 = vmatpush1.msra.mxu0 0.0
    %969 = vmatprep.subr.mxu0 0.0
    %970 = vmatpush1.msra.mxu0 0.0
    %971 = vmatprep.subr.mxu0 0.0
    %972 = vmatpush1.msra.mxu0 0.0
    %973 = vmatprep.subr.mxu0 0.0
    %974 = vmatpush1.msra.mxu0 0.0
    %975 = vmatprep.subr.mxu0 0.0
    %976 = vmatpush1.msra.mxu0 0.0
    %977 = vmatprep.subr.mxu0 0.0
    %978 = vmatpush1.msra.mxu0 0.0
    %979 = vmatprep.subr.mxu0 0.0
    %980 = vmatpush1.msra.mxu0 0.0
    %981 = vmatprep.subr.mxu0 0.0
    %982 = vmatpush1.msra.mxu0 0.0
    %983 = vmatprep.subr.mxu0 0.0
    %984 = vmatpush1.msra.mxu0 0.0
    %985 = vmatprep.subr.mxu0 0.0
    %986 = vmatpush1.msra.mxu0 0.0
    %987 = vmatprep.subr.mxu0 0.0
    %988 = vmatpush1.msra.mxu0 0.0
    %989 = vmatprep.subr.mxu0 0.0
    %990 = vmatpush1.msra.mxu0 0.0
    %991 = vmatprep.subr.mxu0 0.0
    %992 = vmatpush1.msra.mxu0 0.0
    %993 = vmatprep.mubr.f32.mxu0 0.0
    %994 = vmatmul.mubr.f32.gmra.mrb[0].mxu0 %v927
    %v995 = vpop.f32.mrb[0].mxu0
    %v996 = vadd.f32 0.0, %v995
    %v997 = vpop.f32.mrb[0].mxu0
    %998 = vdwg.mxu0
    %v999 = vadd.f32 %v925, %v996
    %v1000 = vtanh.pop %v999
    %v1001 = vadd.f32 %v1000, 1.0
    %v1002 = vmul.f32 %v1001, 0.5
    %v1003 = vmul.f32 %v1002, %v767
    %1005 = vrot.lane.b32.xlu0 %v1000, 64
    %v1006 = vpop.permute.xlu0 %1005
    %v1008 = vmul.f32 %v1002, %v1006
    %1010 = vrot.lane.b32.xlu0 %v1008, 32
    %v1011 = vpop.permute.xlu0 %1010
    %v1013 = vadd.f32 %v1003, %v1011
    %v1014 = vtanh.pop %v1013
    %1016 = vrot.lane.b32.xlu0 %v1014, 64
    %v1017 = vpop.permute.xlu0 %1016
    %v1019 = vmul.f32 %v1002, %v1017
    %1021 = vrot.lane.b32.xlu0 %v1019, 32
    %v1022 = vpop.permute.xlu0 %1021
    %v1023 = vsel %vm103, %v1022, 0
    %1025 = vmatprep.subr.mxu0 0.0
    %1026 = vmatpush1.msra.mxu0 %v94
    %1027 = vmatprep.subr.mxu0 0.0
    %1028 = vmatpush1.msra.mxu0 %v95
    %1029 = vmatprep.subr.mxu0 0.0
    %1030 = vmatpush1.msra.mxu0 %v96
    %1031 = vmatprep.subr.mxu0 0.0
    %1032 = vmatpush1.msra.mxu0 %v97
    %1033 = vmatprep.subr.mxu0 0.0
    %1034 = vmatpush1.msra.mxu0 0.0
    %1035 = vmatprep.subr.mxu0 0.0
    %1036 = vmatpush1.msra.mxu0 0.0
    %1037 = vmatprep.subr.mxu0 0.0
    %1038 = vmatpush1.msra.mxu0 0.0
    %1039 = vmatprep.subr.mxu0 0.0
    %1040 = vmatpush1.msra.mxu0 0.0
    %1041 = vmatprep.subr.mxu0 0.0
    %1042 = vmatpush1.msra.mxu0 0.0
    %1043 = vmatprep.subr.mxu0 0.0
    %1044 = vmatpush1.msra.mxu0 0.0
    %1045 = vmatprep.subr.mxu0 0.0
    %1046 = vmatpush1.msra.mxu0 0.0
    %1047 = vmatprep.subr.mxu0 0.0
    %1048 = vmatpush1.msra.mxu0 0.0
    %1049 = vmatprep.subr.mxu0 0.0
    %1050 = vmatpush1.msra.mxu0 0.0
    %1051 = vmatprep.subr.mxu0 0.0
    %1052 = vmatpush1.msra.mxu0 0.0
    %1053 = vmatprep.subr.mxu0 0.0
    %1054 = vmatpush1.msra.mxu0 0.0
    %1055 = vmatprep.subr.mxu0 0.0
    %1056 = vmatpush1.msra.mxu0 0.0
    %1057 = vmatprep.subr.mxu0 0.0
    %1058 = vmatpush1.msra.mxu0 0.0
    %1059 = vmatprep.subr.mxu0 0.0
    %1060 = vmatpush1.msra.mxu0 0.0
    %1061 = vmatprep.subr.mxu0 0.0
    %1062 = vmatpush1.msra.mxu0 0.0
    %1063 = vmatprep.subr.mxu0 0.0
    %1064 = vmatpush1.msra.mxu0 0.0
    %1065 = vmatprep.subr.mxu0 0.0
    %1066 = vmatpush1.msra.mxu0 0.0
    %1067 = vmatprep.subr.mxu0 0.0
    %1068 = vmatpush1.msra.mxu0 0.0
    %1069 = vmatprep.subr.mxu0 0.0
    %1070 = vmatpush1.msra.mxu0 0.0
    %1071 = vmatprep.subr.mxu0 0.0
    %1072 = vmatpush1.msra.mxu0 0.0
    %1073 = vmatprep.subr.mxu0 0.0
    %1074 = vmatpush1.msra.mxu0 0.0
    %1075 = vmatprep.subr.mxu0 0.0
    %1076 = vmatpush1.msra.mxu0 0.0
    %1077 = vmatprep.subr.mxu0 0.0
    %1078 = vmatpush1.msra.mxu0 0.0
    %1079 = vmatprep.subr.mxu0 0.0
    %1080 = vmatpush1.msra.mxu0 0.0
    %1081 = vmatprep.subr.mxu0 0.0
    %1082 = vmatpush1.msra.mxu0 0.0
    %1083 = vmatprep.subr.mxu0 0.0
    %1084 = vmatpush1.msra.mxu0 0.0
    %1085 = vmatprep.subr.mxu0 0.0
    %1086 = vmatpush1.msra.mxu0 0.0
    %1087 = vmatprep.subr.mxu0 0.0
    %1088 = vmatpush1.msra.mxu0 0.0
    %1089 = vmatprep.mubr.f32.mxu0 0.0
    %1090 = vmatmul.mubr.f32.gmra.mrb[0].mxu0 %v1023
    %v1091 = vpop.f32.mrb[0].mxu0
    %v1092 = vadd.f32 %v281, %v1091
    %v1093 = vpop.f32.mrb[0].mxu0
    %1094 = vdwg.mxu0
    %v1095 = vtanh.pop %v1092
    %s1096 = scalar_lea.vmem [#allocation5], 24
    %v1097 = vld [vmem:[%s1096] sm:$0xff]
    %v1098 = vmul.f32 %v1095, %v1097
    %s1099 = scalar_lea.vmem [#allocation2], 32
    %v1100 = vld [vmem:[%s1099] sm:$0xff]
    %1101 = vmatprep.subr.mxu0 0.0
    %1102 = vmatpush1.msra.mxu0 %v90
    %1103 = vmatprep.subr.mxu0 0.0
    %1104 = vmatpush1.msra.mxu0 %v91
    %1105 = vmatprep.subr.mxu0 0.0
    %1106 = vmatpush1.msra.mxu0 %v92
    %1107 = vmatprep.subr.mxu0 0.0
    %1108 = vmatpush1.msra.mxu0 %v93
    %1109 = vmatprep.subr.mxu0 0.0
    %1110 = vmatpush1.msra.mxu0 0.0
    %1111 = vmatprep.subr.mxu0 0.0
    %1112 = vmatpush1.msra.mxu0 0.0
    %1113 = vmatprep.subr.mxu0 0.0
    %1114 = vmatpush1.msra.mxu0 0.0
    %1115 = vmatprep.subr.mxu0 0.0
    %1116 = vmatpush1.msra.mxu0 0.0
    %1117 = vmatprep.subr.mxu0 0.0
    %1118 = vmatpush1.msra.mxu0 0.0
    %1119 = vmatprep.subr.mxu0 0.0
    %1120 = vmatpush1.msra.mxu0 0.0
    %1121 = vmatprep.subr.mxu0 0.0
    %1122 = vmatpush1.msra.mxu0 0.0
    %1123 = vmatprep.subr.mxu0 0.0
    %1124 = vmatpush1.msra.mxu0 0.0
    %1125 = vmatprep.subr.mxu0 0.0
    %1126 = vmatpush1.msra.mxu0 0.0
    %1127 = vmatprep.subr.mxu0 0.0
    %1128 = vmatpush1.msra.mxu0 0.0
    %1129 = vmatprep.subr.mxu0 0.0
    %1130 = vmatpush1.msra.mxu0 0.0
    %1131 = vmatprep.subr.mxu0 0.0
    %1132 = vmatpush1.msra.mxu0 0.0
    %1133 = vmatprep.subr.mxu0 0.0
    %1134 = vmatpush1.msra.mxu0 0.0
    %1135 = vmatprep.subr.mxu0 0.0
    %1136 = vmatpush1.msra.mxu0 0.0
    %1137 = vmatprep.subr.mxu0 0.0
    %1138 = vmatpush1.msra.mxu0 0.0
    %1139 = vmatprep.subr.mxu0 0.0
    %1140 = vmatpush1.msra.mxu0 0.0
    %1141 = vmatprep.subr.mxu0 0.0
    %1142 = vmatpush1.msra.mxu0 0.0
    %1143 = vmatprep.subr.mxu0 0.0
    %1144 = vmatpush1.msra.mxu0 0.0
    %1145 = vmatprep.subr.mxu0 0.0
    %1146 = vmatpush1.msra.mxu0 0.0
    %1147 = vmatprep.subr.mxu0 0.0
    %1148 = vmatpush1.msra.mxu0 0.0
    %1149 = vmatprep.subr.mxu0 0.0
    %1150 = vmatpush1.msra.mxu0 0.0
    %1151 = vmatprep.subr.mxu0 0.0
    %1152 = vmatpush1.msra.mxu0 0.0
    %1153 = vmatprep.subr.mxu0 0.0
    %1154 = vmatpush1.msra.mxu0 0.0
    %1155 = vmatprep.subr.mxu0 0.0
    %1156 = vmatpush1.msra.mxu0 0.0
    %1157 = vmatprep.subr.mxu0 0.0
    %1158 = vmatpush1.msra.mxu0 0.0
    %1159 = vmatprep.subr.mxu0 0.0
    %1160 = vmatpush1.msra.mxu0 0.0
    %1161 = vmatprep.subr.mxu0 0.0
    %1162 = vmatpush1.msra.mxu0 0.0
    %1163 = vmatprep.subr.mxu0 0.0
    %1164 = vmatpush1.msra.mxu0 0.0
    %1165 = vmatprep.mubr.f32.mxu0 0.0
    %1166 = vmatmul.mubr.f32.gmra.mrb[0].mxu0 %v1023
    %v1167 = vpop.f32.mrb[0].mxu0
    %v1168 = vadd.f32 0.0, %v1167
    %v1169 = vpop.f32.mrb[0].mxu0
    %1170 = vdwg.mxu0
    %v1171 = vadd.f32 %v1100, %v1168
    %v1173 = vsel %vm178, %v1098, 0
    %1175 = vmatprep.subr.mxu0 0.0
    %1176 = vmatpush1.msra.mxu0 %v88
    %1177 = vmatprep.subr.mxu0 0.0
    %1178 = vmatpush1.msra.mxu0 %v89
    %1179 = vmatprep.subr.mxu0 0.0
    %1180 = vmatpush1.msra.mxu0 0.0
    %1181 = vmatprep.subr.mxu0 0.0
    %1182 = vmatpush1.msra.mxu0 0.0
    %1183 = vmatprep.subr.mxu0 0.0
    %1184 = vmatpush1.msra.mxu0 0.0
    %1185 = vmatprep.subr.mxu0 0.0
    %1186 = vmatpush1.msra.mxu0 0.0
    %1187 = vmatprep.subr.mxu0 0.0
    %1188 = vmatpush1.msra.mxu0 0.0
    %1189 = vmatprep.subr.mxu0 0.0
    %1190 = vmatpush1.msra.mxu0 0.0
    %1191 = vmatprep.subr.mxu0 0.0
    %1192 = vmatpush1.msra.mxu0 0.0
    %1193 = vmatprep.subr.mxu0 0.0
    %1194 = vmatpush1.msra.mxu0 0.0
    %1195 = vmatprep.subr.mxu0 0.0
    %1196 = vmatpush1.msra.mxu0 0.0
    %1197 = vmatprep.subr.mxu0 0.0
    %1198 = vmatpush1.msra.mxu0 0.0
    %1199 = vmatprep.subr.mxu0 0.0
    %1200 = vmatpush1.msra.mxu0 0.0
    %1201 = vmatprep.subr.mxu0 0.0
    %1202 = vmatpush1.msra.mxu0 0.0
    %1203 = vmatprep.subr.mxu0 0.0
    %1204 = vmatpush1.msra.mxu0 0.0
    %1205 = vmatprep.subr.mxu0 0.0
    %1206 = vmatpush1.msra.mxu0 0.0
    %1207 = vmatprep.subr.mxu0 0.0
    %1208 = vmatpush1.msra.mxu0 0.0
    %1209 = vmatprep.subr.mxu0 0.0
    %1210 = vmatpush1.msra.mxu0 0.0
    %1211 = vmatprep.subr.mxu0 0.0
    %1212 = vmatpush1.msra.mxu0 0.0
    %1213 = vmatprep.subr.mxu0 0.0
    %1214 = vmatpush1.msra.mxu0 0.0
    %1215 = vmatprep.subr.mxu0 0.0
    %1216 = vmatpush1.msra.mxu0 0.0
    %1217 = vmatprep.subr.mxu0 0.0
    %1218 = vmatpush1.msra.mxu0 0.0
    %1219 = vmatprep.subr.mxu0 0.0
    %1220 = vmatpush1.msra.mxu0 0.0
    %1221 = vmatprep.subr.mxu0 0.0
    %1222 = vmatpush1.msra.mxu0 0.0
    %1223 = vmatprep.subr.mxu0 0.0
    %1224 = vmatpush1.msra.mxu0 0.0
    %1225 = vmatprep.subr.mxu0 0.0
    %1226 = vmatpush1.msra.mxu0 0.0
    %1227 = vmatprep.subr.mxu0 0.0
    %1228 = vmatpush1.msra.mxu0 0.0
    %1229 = vmatprep.subr.mxu0 0.0
    %1230 = vmatpush1.msra.mxu0 0.0
    %1231 = vmatprep.subr.mxu0 0.0
    %1232 = vmatpush1.msra.mxu0 0.0
    %1233 = vmatprep.subr.mxu0 0.0
    %1234 = vmatpush1.msra.mxu0 0.0
    %1235 = vmatprep.subr.mxu0 0.0
    %1236 = vmatpush1.msra.mxu0 0.0
    %1237 = vmatprep.subr.mxu0 0.0
    %1238 = vmatpush1.msra.mxu0 0.0
    %1239 = vmatprep.mubr.f32.mxu0 0.0
    %1240 = vmatmul.mubr.f32.gmra.mrb[0].mxu0 %v1173
    %v1241 = vpop.f32.mrb[0].mxu0
    %v1242 = vadd.f32 0.0, %v1241
    %v1243 = vpop.f32.mrb[0].mxu0
    %1244 = vdwg.mxu0
    %v1245 = vadd.f32 %v1171, %v1242
    %v1246 = vtanh.pop %v1245
    %v1247 = vadd.f32 %v1246, 1.0
    %v1248 = vmul.f32 %v1247, 0.5
    %v1249 = vmul.f32 %v1248, %v1013
    %1251 = vrot.lane.b32.xlu0 %v1246, 64
    %v1252 = vpop.permute.xlu0 %1251
    %v1254 = vmul.f32 %v1248, %v1252
    %1256 = vrot.lane.b32.xlu0 %v1254, 32
    %v1257 = vpop.permute.xlu0 %1256
    %v1259 = vadd.f32 %v1249, %v1257
    %v1260 = vtanh.pop %v1259
    %1262 = vrot.lane.b32.xlu0 %v1260, 64
    %v1263 = vpop.permute.xlu0 %1262
    %v1265 = vmul.f32 %v1248, %v1263
    %1267 = vrot.lane.b32.xlu0 %v1265, 32
    %v1268 = vpop.permute.xlu0 %1267
    %v1269 = vsel %vm103, %v1268, 0
    %1271 = vmatprep.subr.mxu0 0.0
    %1272 = vmatpush1.msra.mxu0 %v94
    %1273 = vmatprep.subr.mxu0 0.0
    %1274 = vmatpush1.msra.mxu0 %v95
    %1275 = vmatprep.subr.mxu0 0.0
    %1276 = vmatpush1.msra.mxu0 %v96
    %1277 = vmatprep.subr.mxu0 0.0
    %1278 = vmatpush1.msra.mxu0 %v97
    %1279 = vmatprep.subr.mxu0 0.0
    %1280 = vmatpush1.msra.mxu0 0.0
    %1281 = vmatprep.subr.mxu0 0.0
    %1282 = vmatpush1.msra.mxu0 0.0
    %1283 = vmatprep.subr.mxu0 0.0
    %1284 = vmatpush1.msra.mxu0 0.0
    %1285 = vmatprep.subr.mxu0 0.0
    %1286 = vmatpush1.msra.mxu0 0.0
    %1287 = vmatprep.subr.mxu0 0.0
    %1288 = vmatpush1.msra.mxu0 0.0
    %1289 = vmatprep.subr.mxu0 0.0
    %1290 = vmatpush1.msra.mxu0 0.0
    %1291 = vmatprep.subr.mxu0 0.0
    %1292 = vmatpush1.msra.mxu0 0.0
    %1293 = vmatprep.subr.mxu0 0.0
    %1294 = vmatpush1.msra.mxu0 0.0
    %1295 = vmatprep.subr.mxu0 0.0
    %1296 = vmatpush1.msra.mxu0 0.0
    %1297 = vmatprep.subr.mxu0 0.0
    %1298 = vmatpush1.msra.mxu0 0.0
    %1299 = vmatprep.subr.mxu0 0.0
    %1300 = vmatpush1.msra.mxu0 0.0
    %1301 = vmatprep.subr.mxu0 0.0
    %1302 = vmatpush1.msra.mxu0 0.0
    %1303 = vmatprep.subr.mxu0 0.0
    %1304 = vmatpush1.msra.mxu0 0.0
    %1305 = vmatprep.subr.mxu0 0.0
    %1306 = vmatpush1.msra.mxu0 0.0
    %1307 = vmatprep.subr.mxu0 0.0
    %1308 = vmatpush1.msra.mxu0 0.0
    %1309 = vmatprep.subr.mxu0 0.0
    %1310 = vmatpush1.msra.mxu0 0.0
    %1311 = vmatprep.subr.mxu0 0.0
    %1312 = vmatpush1.msra.mxu0 0.0
    %1313 = vmatprep.subr.mxu0 0.0
    %1314 = vmatpush1.msra.mxu0 0.0
    %1315 = vmatprep.subr.mxu0 0.0
    %1316 = vmatpush1.msra.mxu0 0.0
    %1317 = vmatprep.subr.mxu0 0.0
    %1318 = vmatpush1.msra.mxu0 0.0
    %1319 = vmatprep.subr.mxu0 0.0
    %1320 = vmatpush1.msra.mxu0 0.0
    %1321 = vmatprep.subr.mxu0 0.0
    %1322 = vmatpush1.msra.mxu0 0.0
    %1323 = vmatprep.subr.mxu0 0.0
    %1324 = vmatpush1.msra.mxu0 0.0
    %1325 = vmatprep.subr.mxu0 0.0
    %1326 = vmatpush1.msra.mxu0 0.0
    %1327 = vmatprep.subr.mxu0 0.0
    %1328 = vmatpush1.msra.mxu0 0.0
    %1329 = vmatprep.subr.mxu0 0.0
    %1330 = vmatpush1.msra.mxu0 0.0
    %1331 = vmatprep.subr.mxu0 0.0
    %1332 = vmatpush1.msra.mxu0 0.0
    %1333 = vmatprep.subr.mxu0 0.0
    %1334 = vmatpush1.msra.mxu0 0.0
    %1335 = vmatprep.mubr.f32.mxu0 0.0
    %1336 = vmatmul.mubr.f32.gmra.mrb[0].mxu0 %v1269
    %v1337 = vpop.f32.mrb[0].mxu0
    %v1338 = vadd.f32 %v281, %v1337
    %v1339 = vpop.f32.mrb[0].mxu0
    %1340 = vdwg.mxu0
    %v1341 = vtanh.pop %v1338
    %s1342 = scalar_lea.vmem [#allocation5], 32
    %v1343 = vld [vmem:[%s1342] sm:$0xff]
    %v1344 = vmul.f32 %v1341, %v1343
    %s1345 = scalar_lea.vmem [#allocation2], 40
    %v1346 = vld [vmem:[%s1345] sm:$0xff]
    %1347 = vmatprep.subr.mxu0 0.0
    %1348 = vmatpush1.msra.mxu0 %v90
    %1349 = vmatprep.subr.mxu0 0.0
    %1350 = vmatpush1.msra.mxu0 %v91
    %1351 = vmatprep.subr.mxu0 0.0
    %1352 = vmatpush1.msra.mxu0 %v92
    %1353 = vmatprep.subr.mxu0 0.0
    %1354 = vmatpush1.msra.mxu0 %v93
    %1355 = vmatprep.subr.mxu0 0.0
    %1356 = vmatpush1.msra.mxu0 0.0
    %1357 = vmatprep.subr.mxu0 0.0
    %1358 = vmatpush1.msra.mxu0 0.0
    %1359 = vmatprep.subr.mxu0 0.0
    %1360 = vmatpush1.msra.mxu0 0.0
    %1361 = vmatprep.subr.mxu0 0.0
    %1362 = vmatpush1.msra.mxu0 0.0
    %1363 = vmatprep.subr.mxu0 0.0
    %1364 = vmatpush1.msra.mxu0 0.0
    %1365 = vmatprep.subr.mxu0 0.0
    %1366 = vmatpush1.msra.mxu0 0.0
    %1367 = vmatprep.subr.mxu0 0.0
    %1368 = vmatpush1.msra.mxu0 0.0
    %1369 = vmatprep.subr.mxu0 0.0
    %1370 = vmatpush1.msra.mxu0 0.0
    %1371 = vmatprep.subr.mxu0 0.0
    %1372 = vmatpush1.msra.mxu0 0.0
    %1373 = vmatprep.subr.mxu0 0.0
    %1374 = vmatpush1.msra.mxu0 0.0
    %1375 = vmatprep.subr.mxu0 0.0
    %1376 = vmatpush1.msra.mxu0 0.0
    %1377 = vmatprep.subr.mxu0 0.0
    %1378 = vmatpush1.msra.mxu0 0.0
    %1379 = vmatprep.subr.mxu0 0.0
    %1380 = vmatpush1.msra.mxu0 0.0
    %1381 = vmatprep.subr.mxu0 0.0
    %1382 = vmatpush1.msra.mxu0 0.0
    %1383 = vmatprep.subr.mxu0 0.0
    %1384 = vmatpush1.msra.mxu0 0.0
    %1385 = vmatprep.subr.mxu0 0.0
    %1386 = vmatpush1.msra.mxu0 0.0
    %1387 = vmatprep.subr.mxu0 0.0
    %1388 = vmatpush1.msra.mxu0 0.0
    %1389 = vmatprep.subr.mxu0 0.0
    %1390 = vmatpush1.msra.mxu0 0.0
    %1391 = vmatprep.subr.mxu0 0.0
    %1392 = vmatpush1.msra.mxu0 0.0
    %1393 = vmatprep.subr.mxu0 0.0
    %1394 = vmatpush1.msra.mxu0 0.0
    %1395 = vmatprep.subr.mxu0 0.0
    %1396 = vmatpush1.msra.mxu0 0.0
    %1397 = vmatprep.subr.mxu0 0.0
    %1398 = vmatpush1.msra.mxu0 0.0
    %1399 = vmatprep.subr.mxu0 0.0
    %1400 = vmatpush1.msra.mxu0 0.0
    %1401 = vmatprep.subr.mxu0 0.0
    %1402 = vmatpush1.msra.mxu0 0.0
    %1403 = vmatprep.subr.mxu0 0.0
    %1404 = vmatpush1.msra.mxu0 0.0
    %1405 = vmatprep.subr.mxu0 0.0
    %1406 = vmatpush1.msra.mxu0 0.0
    %1407 = vmatprep.subr.mxu0 0.0
    %1408 = vmatpush1.msra.mxu0 0.0
    %1409 = vmatprep.subr.mxu0 0.0
    %1410 = vmatpush1.msra.mxu0 0.0
    %1411 = vmatprep.mubr.f32.mxu0 0.0
    %1412 = vmatmul.mubr.f32.gmra.mrb[0].mxu0 %v1269
    %v1413 = vpop.f32.mrb[0].mxu0
    %v1414 = vadd.f32 0.0, %v1413
    %v1415 = vpop.f32.mrb[0].mxu0
    %1416 = vdwg.mxu0
    %v1417 = vadd.f32 %v1346, %v1414
    %v1419 = vsel %vm178, %v1344, 0
    %1421 = vmatprep.subr.mxu0 0.0
    %1422 = vmatpush1.msra.mxu0 %v88
    %1423 = vmatprep.subr.mxu0 0.0
    %1424 = vmatpush1.msra.mxu0 %v89
    %1425 = vmatprep.subr.mxu0 0.0
    %1426 = vmatpush1.msra.mxu0 0.0
    %1427 = vmatprep.subr.mxu0 0.0
    %1428 = vmatpush1.msra.mxu0 0.0
    %1429 = vmatprep.subr.mxu0 0.0
    %1430 = vmatpush1.msra.mxu0 0.0
    %1431 = vmatprep.subr.mxu0 0.0
    %1432 = vmatpush1.msra.mxu0 0.0
    %1433 = vmatprep.subr.mxu0 0.0
    %1434 = vmatpush1.msra.mxu0 0.0
    %1435 = vmatprep.subr.mxu0 0.0
    %1436 = vmatpush1.msra.mxu0 0.0
    %1437 = vmatprep.subr.mxu0 0.0
    %1438 = vmatpush1.msra.mxu0 0.0
    %1439 = vmatprep.subr.mxu0 0.0
    %1440 = vmatpush1.msra.mxu0 0.0
    %1441 = vmatprep.subr.mxu0 0.0
    %1442 = vmatpush1.msra.mxu0 0.0
    %1443 = vmatprep.subr.mxu0 0.0
    %1444 = vmatpush1.msra.mxu0 0.0
    %1445 = vmatprep.subr.mxu0 0.0
    %1446 = vmatpush1.msra.mxu0 0.0
    %1447 = vmatprep.subr.mxu0 0.0
    %1448 = vmatpush1.msra.mxu0 0.0
    %1449 = vmatprep.subr.mxu0 0.0
    %1450 = vmatpush1.msra.mxu0 0.0
    %1451 = vmatprep.subr.mxu0 0.0
    %1452 = vmatpush1.msra.mxu0 0.0
    %1453 = vmatprep.subr.mxu0 0.0
    %1454 = vmatpush1.msra.mxu0 0.0
    %1455 = vmatprep.subr.mxu0 0.0
    %1456 = vmatpush1.msra.mxu0 0.0
    %1457 = vmatprep.subr.mxu0 0.0
    %1458 = vmatpush1.msra.mxu0 0.0
    %1459 = vmatprep.subr.mxu0 0.0
    %1460 = vmatpush1.msra.mxu0 0.0
    %1461 = vmatprep.subr.mxu0 0.0
    %1462 = vmatpush1.msra.mxu0 0.0
    %1463 = vmatprep.subr.mxu0 0.0
    %1464 = vmatpush1.msra.mxu0 0.0
    %1465 = vmatprep.subr.mxu0 0.0
    %1466 = vmatpush1.msra.mxu0 0.0
    %1467 = vmatprep.subr.mxu0 0.0
    %1468 = vmatpush1.msra.mxu0 0.0
    %1469 = vmatprep.subr.mxu0 0.0
    %1470 = vmatpush1.msra.mxu0 0.0
    %1471 = vmatprep.subr.mxu0 0.0
    %1472 = vmatpush1.msra.mxu0 0.0
    %1473 = vmatprep.subr.mxu0 0.0
    %1474 = vmatpush1.msra.mxu0 0.0
    %1475 = vmatprep.subr.mxu0 0.0
    %1476 = vmatpush1.msra.mxu0 0.0
    %1477 = vmatprep.subr.mxu0 0.0
    %1478 = vmatpush1.msra.mxu0 0.0
    %1479 = vmatprep.subr.mxu0 0.0
    %1480 = vmatpush1.msra.mxu0 0.0
    %1481 = vmatprep.subr.mxu0 0.0
    %1482 = vmatpush1.msra.mxu0 0.0
    %1483 = vmatprep.subr.mxu0 0.0
    %1484 = vmatpush1.msra.mxu0 0.0
    %1485 = vmatprep.mubr.f32.mxu0 0.0
    %1486 = vmatmul.mubr.f32.gmra.mrb[0].mxu0 %v1419
    %v1487 = vpop.f32.mrb[0].mxu0
    %v1488 = vadd.f32 0.0, %v1487
    %v1489 = vpop.f32.mrb[0].mxu0
    %1490 = vdwg.mxu0
    %v1491 = vadd.f32 %v1417, %v1488
    %v1492 = vtanh.pop %v1491
    %v1493 = vadd.f32 %v1492, 1.0
    %v1494 = vmul.f32 %v1493, 0.5
    %v1495 = vmul.f32 %v1494, %v1259
    %1497 = vrot.lane.b32.xlu0 %v1492, 64
    %v1498 = vpop.permute.xlu0 %1497
    %v1500 = vmul.f32 %v1494, %v1498
    %1502 = vrot.lane.b32.xlu0 %v1500, 32
    %v1503 = vpop.permute.xlu0 %1502
    %v1505 = vadd.f32 %v1495, %v1503
    %v1506 = vtanh.pop %v1505
    %1508 = vrot.lane.b32.xlu0 %v1506, 64
    %v1509 = vpop.permute.xlu0 %1508
    %v1511 = vmul.f32 %v1494, %v1509
    %1513 = vrot.lane.b32.xlu0 %v1511, 32
    %v1514 = vpop.permute.xlu0 %1513
    %v1515 = vsel %vm103, %v1514, 0
    %1517 = vmatprep.subr.mxu0 0.0
    %1518 = vmatpush1.msra.mxu0 %v94
    %1519 = vmatprep.subr.mxu0 0.0
    %1520 = vmatpush1.msra.mxu0 %v95
    %1521 = vmatprep.subr.mxu0 0.0
    %1522 = vmatpush1.msra.mxu0 %v96
    %1523 = vmatprep.subr.mxu0 0.0
    %1524 = vmatpush1.msra.mxu0 %v97
    %1525 = vmatprep.subr.mxu0 0.0
    %1526 = vmatpush1.msra.mxu0 0.0
    %1527 = vmatprep.subr.mxu0 0.0
    %1528 = vmatpush1.msra.mxu0 0.0
    %1529 = vmatprep.subr.mxu0 0.0
    %1530 = vmatpush1.msra.mxu0 0.0
    %1531 = vmatprep.subr.mxu0 0.0
    %1532 = vmatpush1.msra.mxu0 0.0
    %1533 = vmatprep.subr.mxu0 0.0
    %1534 = vmatpush1.msra.mxu0 0.0
    %1535 = vmatprep.subr.mxu0 0.0
    %1536 = vmatpush1.msra.mxu0 0.0
    %1537 = vmatprep.subr.mxu0 0.0
    %1538 = vmatpush1.msra.mxu0 0.0
    %1539 = vmatprep.subr.mxu0 0.0
    %1540 = vmatpush1.msra.mxu0 0.0
    %1541 = vmatprep.subr.mxu0 0.0
    %1542 = vmatpush1.msra.mxu0 0.0
    %1543 = vmatprep.subr.mxu0 0.0
    %1544 = vmatpush1.msra.mxu0 0.0
    %1545 = vmatprep.subr.mxu0 0.0
    %1546 = vmatpush1.msra.mxu0 0.0
    %1547 = vmatprep.subr.mxu0 0.0
    %1548 = vmatpush1.msra.mxu0 0.0
    %1549 = vmatprep.subr.mxu0 0.0
    %1550 = vmatpush1.msra.mxu0 0.0
    %1551 = vmatprep.subr.mxu0 0.0
    %1552 = vmatpush1.msra.mxu0 0.0
    %1553 = vmatprep.subr.mxu0 0.0
    %1554 = vmatpush1.msra.mxu0 0.0
    %1555 = vmatprep.subr.mxu0 0.0
    %1556 = vmatpush1.msra.mxu0 0.0
    %1557 = vmatprep.subr.mxu0 0.0
    %1558 = vmatpush1.msra.mxu0 0.0
    %1559 = vmatprep.subr.mxu0 0.0
    %1560 = vmatpush1.msra.mxu0 0.0
    %1561 = vmatprep.subr.mxu0 0.0
    %1562 = vmatpush1.msra.mxu0 0.0
    %1563 = vmatprep.subr.mxu0 0.0
    %1564 = vmatpush1.msra.mxu0 0.0
    %1565 = vmatprep.subr.mxu0 0.0
    %1566 = vmatpush1.msra.mxu0 0.0
    %1567 = vmatprep.subr.mxu0 0.0
    %1568 = vmatpush1.msra.mxu0 0.0
    %1569 = vmatprep.subr.mxu0 0.0
    %1570 = vmatpush1.msra.mxu0 0.0
    %1571 = vmatprep.subr.mxu0 0.0
    %1572 = vmatpush1.msra.mxu0 0.0
    %1573 = vmatprep.subr.mxu0 0.0
    %1574 = vmatpush1.msra.mxu0 0.0
    %1575 = vmatprep.subr.mxu0 0.0
    %1576 = vmatpush1.msra.mxu0 0.0
    %1577 = vmatprep.subr.mxu0 0.0
    %1578 = vmatpush1.msra.mxu0 0.0
    %1579 = vmatprep.subr.mxu0 0.0
    %1580 = vmatpush1.msra.mxu0 0.0
    %1581 = vmatprep.mubr.f32.mxu0 0.0
    %1582 = vmatmul.mubr.f32.gmra.mrb[0].mxu0 %v1515
    %v1583 = vpop.f32.mrb[0].mxu0
    %v1584 = vadd.f32 %v281, %v1583
    %v1585 = vpop.f32.mrb[0].mxu0
    %1586 = vdwg.mxu0
    %v1587 = vtanh.pop %v1584
    %s1588 = scalar_lea.vmem [#allocation5], 40
    %v1589 = vld [vmem:[%s1588] sm:$0xff]
    %v1590 = vmul.f32 %v1587, %v1589
    %s1591 = scalar_lea.vmem [#allocation2], 48
    %v1592 = vld [vmem:[%s1591] sm:$0xff]
    %1593 = vmatprep.subr.mxu0 0.0
    %1594 = vmatpush1.msra.mxu0 %v90
    %1595 = vmatprep.subr.mxu0 0.0
    %1596 = vmatpush1.msra.mxu0 %v91
    %1597 = vmatprep.subr.mxu0 0.0
    %1598 = vmatpush1.msra.mxu0 %v92
    %1599 = vmatprep.subr.mxu0 0.0
    %1600 = vmatpush1.msra.mxu0 %v93
    %1601 = vmatprep.subr.mxu0 0.0
    %1602 = vmatpush1.msra.mxu0 0.0
    %1603 = vmatprep.subr.mxu0 0.0
    %1604 = vmatpush1.msra.mxu0 0.0
    %1605 = vmatprep.subr.mxu0 0.0
    %1606 = vmatpush1.msra.mxu0 0.0
    %1607 = vmatprep.subr.mxu0 0.0
    %1608 = vmatpush1.msra.mxu0 0.0
    %1609 = vmatprep.subr.mxu0 0.0
    %1610 = vmatpush1.msra.mxu0 0.0
    %1611 = vmatprep.subr.mxu0 0.0
    %1612 = vmatpush1.msra.mxu0 0.0
    %1613 = vmatprep.subr.mxu0 0.0
    %1614 = vmatpush1.msra.mxu0 0.0
    %1615 = vmatprep.subr.mxu0 0.0
    %1616 = vmatpush1.msra.mxu0 0.0
    %1617 = vmatprep.subr.mxu0 0.0
    %1618 = vmatpush1.msra.mxu0 0.0
    %1619 = vmatprep.subr.mxu0 0.0
    %1620 = vmatpush1.msra.mxu0 0.0
    %1621 = vmatprep.subr.mxu0 0.0
    %1622 = vmatpush1.msra.mxu0 0.0
    %1623 = vmatprep.subr.mxu0 0.0
    %1624 = vmatpush1.msra.mxu0 0.0
    %1625 = vmatprep.subr.mxu0 0.0
    %1626 = vmatpush1.msra.mxu0 0.0
    %1627 = vmatprep.subr.mxu0 0.0
    %1628 = vmatpush1.msra.mxu0 0.0
    %1629 = vmatprep.subr.mxu0 0.0
    %1630 = vmatpush1.msra.mxu0 0.0
    %1631 = vmatprep.subr.mxu0 0.0
    %1632 = vmatpush1.msra.mxu0 0.0
    %1633 = vmatprep.subr.mxu0 0.0
    %1634 = vmatpush1.msra.mxu0 0.0
    %1635 = vmatprep.subr.mxu0 0.0
    %1636 = vmatpush1.msra.mxu0 0.0
    %1637 = vmatprep.subr.mxu0 0.0
    %1638 = vmatpush1.msra.mxu0 0.0
    %1639 = vmatprep.subr.mxu0 0.0
    %1640 = vmatpush1.msra.mxu0 0.0
    %1641 = vmatprep.subr.mxu0 0.0
    %1642 = vmatpush1.msra.mxu0 0.0
    %1643 = vmatprep.subr.mxu0 0.0
    %1644 = vmatpush1.msra.mxu0 0.0
    %1645 = vmatprep.subr.mxu0 0.0
    %1646 = vmatpush1.msra.mxu0 0.0
    %1647 = vmatprep.subr.mxu0 0.0
    %1648 = vmatpush1.msra.mxu0 0.0
    %1649 = vmatprep.subr.mxu0 0.0
    %1650 = vmatpush1.msra.mxu0 0.0
    %1651 = vmatprep.subr.mxu0 0.0
    %1652 = vmatpush1.msra.mxu0 0.0
    %1653 = vmatprep.subr.mxu0 0.0
    %1654 = vmatpush1.msra.mxu0 0.0
    %1655 = vmatprep.subr.mxu0 0.0
    %1656 = vmatpush1.msra.mxu0 0.0
    %1657 = vmatprep.mubr.f32.mxu0 0.0
    %1658 = vmatmul.mubr.f32.gmra.mrb[0].mxu0 %v1515
    %v1659 = vpop.f32.mrb[0].mxu0
    %v1660 = vadd.f32 0.0, %v1659
    %v1661 = vpop.f32.mrb[0].mxu0
    %1662 = vdwg.mxu0
    %v1663 = vadd.f32 %v1592, %v1660
    %v1665 = vsel %vm178, %v1590, 0
    %1667 = vmatprep.subr.mxu0 0.0
    %1668 = vmatpush1.msra.mxu0 %v88
    %1669 = vmatprep.subr.mxu0 0.0
    %1670 = vmatpush1.msra.mxu0 %v89
    %1671 = vmatprep.subr.mxu0 0.0
    %1672 = vmatpush1.msra.mxu0 0.0
    %1673 = vmatprep.subr.mxu0 0.0
    %1674 = vmatpush1.msra.mxu0 0.0
    %1675 = vmatprep.subr.mxu0 0.0
    %1676 = vmatpush1.msra.mxu0 0.0
    %1677 = vmatprep.subr.mxu0 0.0
    %1678 = vmatpush1.msra.mxu0 0.0
    %1679 = vmatprep.subr.mxu0 0.0
    %1680 = vmatpush1.msra.mxu0 0.0
    %1681 = vmatprep.subr.mxu0 0.0
    %1682 = vmatpush1.msra.mxu0 0.0
    %1683 = vmatprep.subr.mxu0 0.0
    %1684 = vmatpush1.msra.mxu0 0.0
    %1685 = vmatprep.subr.mxu0 0.0
    %1686 = vmatpush1.msra.mxu0 0.0
    %1687 = vmatprep.subr.mxu0 0.0
    %1688 = vmatpush1.msra.mxu0 0.0
    %1689 = vmatprep.subr.mxu0 0.0
    %1690 = vmatpush1.msra.mxu0 0.0
    %1691 = vmatprep.subr.mxu0 0.0
    %1692 = vmatpush1.msra.mxu0 0.0
    %1693 = vmatprep.subr.mxu0 0.0
    %1694 = vmatpush1.msra.mxu0 0.0
    %1695 = vmatprep.subr.mxu0 0.0
    %1696 = vmatpush1.msra.mxu0 0.0
    %1697 = vmatprep.subr.mxu0 0.0
    %1698 = vmatpush1.msra.mxu0 0.0
    %1699 = vmatprep.subr.mxu0 0.0
    %1700 = vmatpush1.msra.mxu0 0.0
    %1701 = vmatprep.subr.mxu0 0.0
    %1702 = vmatpush1.msra.mxu0 0.0
    %1703 = vmatprep.subr.mxu0 0.0
    %1704 = vmatpush1.msra.mxu0 0.0
    %1705 = vmatprep.subr.mxu0 0.0
    %1706 = vmatpush1.msra.mxu0 0.0
    %1707 = vmatprep.subr.mxu0 0.0
    %1708 = vmatpush1.msra.mxu0 0.0
    %1709 = vmatprep.subr.mxu0 0.0
    %1710 = vmatpush1.msra.mxu0 0.0
    %1711 = vmatprep.subr.mxu0 0.0
    %1712 = vmatpush1.msra.mxu0 0.0
    %1713 = vmatprep.subr.mxu0 0.0
    %1714 = vmatpush1.msra.mxu0 0.0
    %1715 = vmatprep.subr.mxu0 0.0
    %1716 = vmatpush1.msra.mxu0 0.0
    %1717 = vmatprep.subr.mxu0 0.0
    %1718 = vmatpush1.msra.mxu0 0.0
    %1719 = vmatprep.subr.mxu0 0.0
    %1720 = vmatpush1.msra.mxu0 0.0
    %1721 = vmatprep.subr.mxu0 0.0
    %1722 = vmatpush1.msra.mxu0 0.0
    %1723 = vmatprep.subr.mxu0 0.0
    %1724 = vmatpush1.msra.mxu0 0.0
    %1725 = vmatprep.subr.mxu0 0.0
    %1726 = vmatpush1.msra.mxu0 0.0
    %1727 = vmatprep.subr.mxu0 0.0
    %1728 = vmatpush1.msra.mxu0 0.0
    %1729 = vmatprep.subr.mxu0 0.0
    %1730 = vmatpush1.msra.mxu0 0.0
    %1731 = vmatprep.mubr.f32.mxu0 0.0
    %1732 = vmatmul.mubr.f32.gmra.mrb[0].mxu0 %v1665
    %v1733 = vpop.f32.mrb[0].mxu0
    %v1734 = vadd.f32 0.0, %v1733
    %v1735 = vpop.f32.mrb[0].mxu0
    %1736 = vdwg.mxu0
    %v1737 = vadd.f32 %v1663, %v1734
    %v1738 = vtanh.pop %v1737
    %v1739 = vadd.f32 %v1738, 1.0
    %v1740 = vmul.f32 %v1739, 0.5
    %v1741 = vmul.f32 %v1740, %v1505
    %1743 = vrot.lane.b32.xlu0 %v1738, 64
    %v1744 = vpop.permute.xlu0 %1743
    %v1746 = vmul.f32 %v1740, %v1744
    %1748 = vrot.lane.b32.xlu0 %v1746, 32
    %v1749 = vpop.permute.xlu0 %1748
    %v1751 = vadd.f32 %v1741, %v1749
    %v1752 = vtanh.pop %v1751
    %1754 = vrot.lane.b32.xlu0 %v1752, 64
    %v1755 = vpop.permute.xlu0 %1754
    %v1757 = vmul.f32 %v1740, %v1755
    %1759 = vrot.lane.b32.xlu0 %v1757, 32
    %v1760 = vpop.permute.xlu0 %1759
    %v1761 = vsel %vm103, %v1760, 0
    %1763 = vmatprep.subr.mxu0 0.0
    %1764 = vmatpush1.msra.mxu0 %v94
    %1765 = vmatprep.subr.mxu0 0.0
    %1766 = vmatpush1.msra.mxu0 %v95
    %1767 = vmatprep.subr.mxu0 0.0
    %1768 = vmatpush1.msra.mxu0 %v96
    %1769 = vmatprep.subr.mxu0 0.0
    %1770 = vmatpush1.msra.mxu0 %v97
    %1771 = vmatprep.subr.mxu0 0.0
    %1772 = vmatpush1.msra.mxu0 0.0
    %1773 = vmatprep.subr.mxu0 0.0
    %1774 = vmatpush1.msra.mxu0 0.0
    %1775 = vmatprep.subr.mxu0 0.0
    %1776 = vmatpush1.msra.mxu0 0.0
    %1777 = vmatprep.subr.mxu0 0.0
    %1778 = vmatpush1.msra.mxu0 0.0
    %1779 = vmatprep.subr.mxu0 0.0
    %1780 = vmatpush1.msra.mxu0 0.0
    %1781 = vmatprep.subr.mxu0 0.0
    %1782 = vmatpush1.msra.mxu0 0.0
    %1783 = vmatprep.subr.mxu0 0.0
    %1784 = vmatpush1.msra.mxu0 0.0
    %1785 = vmatprep.subr.mxu0 0.0
    %1786 = vmatpush1.msra.mxu0 0.0
    %1787 = vmatprep.subr.mxu0 0.0
    %1788 = vmatpush1.msra.mxu0 0.0
    %1789 = vmatprep.subr.mxu0 0.0
    %1790 = vmatpush1.msra.mxu0 0.0
    %1791 = vmatprep.subr.mxu0 0.0
    %1792 = vmatpush1.msra.mxu0 0.0
    %1793 = vmatprep.subr.mxu0 0.0
    %1794 = vmatpush1.msra.mxu0 0.0
    %1795 = vmatprep.subr.mxu0 0.0
    %1796 = vmatpush1.msra.mxu0 0.0
    %1797 = vmatprep.subr.mxu0 0.0
    %1798 = vmatpush1.msra.mxu0 0.0
    %1799 = vmatprep.subr.mxu0 0.0
    %1800 = vmatpush1.msra.mxu0 0.0
    %1801 = vmatprep.subr.mxu0 0.0
    %1802 = vmatpush1.msra.mxu0 0.0
    %1803 = vmatprep.subr.mxu0 0.0
    %1804 = vmatpush1.msra.mxu0 0.0
    %1805 = vmatprep.subr.mxu0 0.0
    %1806 = vmatpush1.msra.mxu0 0.0
    %1807 = vmatprep.subr.mxu0 0.0
    %1808 = vmatpush1.msra.mxu0 0.0
    %1809 = vmatprep.subr.mxu0 0.0
    %1810 = vmatpush1.msra.mxu0 0.0
    %1811 = vmatprep.subr.mxu0 0.0
    %1812 = vmatpush1.msra.mxu0 0.0
    %1813 = vmatprep.subr.mxu0 0.0
    %1814 = vmatpush1.msra.mxu0 0.0
    %1815 = vmatprep.subr.mxu0 0.0
    %1816 = vmatpush1.msra.mxu0 0.0
    %1817 = vmatprep.subr.mxu0 0.0
    %1818 = vmatpush1.msra.mxu0 0.0
    %1819 = vmatprep.subr.mxu0 0.0
    %1820 = vmatpush1.msra.mxu0 0.0
    %1821 = vmatprep.subr.mxu0 0.0
    %1822 = vmatpush1.msra.mxu0 0.0
    %1823 = vmatprep.subr.mxu0 0.0
    %1824 = vmatpush1.msra.mxu0 0.0
    %1825 = vmatprep.subr.mxu0 0.0
    %1826 = vmatpush1.msra.mxu0 0.0
    %1827 = vmatprep.mubr.f32.mxu0 0.0
    %1828 = vmatmul.mubr.f32.gmra.mrb[0].mxu0 %v1761
    %v1829 = vpop.f32.mrb[0].mxu0
    %v1830 = vadd.f32 %v281, %v1829
    %v1831 = vpop.f32.mrb[0].mxu0
    %1832 = vdwg.mxu0
    %v1833 = vtanh.pop %v1830
    %s1834 = scalar_lea.vmem [#allocation5], 48
    %v1835 = vld [vmem:[%s1834] sm:$0xff]
    %v1836 = vmul.f32 %v1833, %v1835
    %s1837 = scalar_lea.vmem [#allocation2], 56
    %v1838 = vld [vmem:[%s1837] sm:$0xff]
    %1839 = vmatprep.subr.mxu0 0.0
    %1840 = vmatpush1.msra.mxu0 %v90
    %1841 = vmatprep.subr.mxu0 0.0
    %1842 = vmatpush1.msra.mxu0 %v91
    %1843 = vmatprep.subr.mxu0 0.0
    %1844 = vmatpush1.msra.mxu0 %v92
    %1845 = vmatprep.subr.mxu0 0.0
    %1846 = vmatpush1.msra.mxu0 %v93
    %1847 = vmatprep.subr.mxu0 0.0
    %1848 = vmatpush1.msra.mxu0 0.0
    %1849 = vmatprep.subr.mxu0 0.0
    %1850 = vmatpush1.msra.mxu0 0.0
    %1851 = vmatprep.subr.mxu0 0.0
    %1852 = vmatpush1.msra.mxu0 0.0
    %1853 = vmatprep.subr.mxu0 0.0
    %1854 = vmatpush1.msra.mxu0 0.0
    %1855 = vmatprep.subr.mxu0 0.0
    %1856 = vmatpush1.msra.mxu0 0.0
    %1857 = vmatprep.subr.mxu0 0.0
    %1858 = vmatpush1.msra.mxu0 0.0
    %1859 = vmatprep.subr.mxu0 0.0
    %1860 = vmatpush1.msra.mxu0 0.0
    %1861 = vmatprep.subr.mxu0 0.0
    %1862 = vmatpush1.msra.mxu0 0.0
    %1863 = vmatprep.subr.mxu0 0.0
    %1864 = vmatpush1.msra.mxu0 0.0
    %1865 = vmatprep.subr.mxu0 0.0
    %1866 = vmatpush1.msra.mxu0 0.0
    %1867 = vmatprep.subr.mxu0 0.0
    %1868 = vmatpush1.msra.mxu0 0.0
    %1869 = vmatprep.subr.mxu0 0.0
    %1870 = vmatpush1.msra.mxu0 0.0
    %1871 = vmatprep.subr.mxu0 0.0
    %1872 = vmatpush1.msra.mxu0 0.0
    %1873 = vmatprep.subr.mxu0 0.0
    %1874 = vmatpush1.msra.mxu0 0.0
    %1875 = vmatprep.subr.mxu0 0.0
    %1876 = vmatpush1.msra.mxu0 0.0
    %1877 = vmatprep.subr.mxu0 0.0
    %1878 = vmatpush1.msra.mxu0 0.0
    %1879 = vmatprep.subr.mxu0 0.0
    %1880 = vmatpush1.msra.mxu0 0.0
    %1881 = vmatprep.subr.mxu0 0.0
    %1882 = vmatpush1.msra.mxu0 0.0
    %1883 = vmatprep.subr.mxu0 0.0
    %1884 = vmatpush1.msra.mxu0 0.0
    %1885 = vmatprep.subr.mxu0 0.0
    %1886 = vmatpush1.msra.mxu0 0.0
    %1887 = vmatprep.subr.mxu0 0.0
    %1888 = vmatpush1.msra.mxu0 0.0
    %1889 = vmatprep.subr.mxu0 0.0
    %1890 = vmatpush1.msra.mxu0 0.0
    %1891 = vmatprep.subr.mxu0 0.0
    %1892 = vmatpush1.msra.mxu0 0.0
    %1893 = vmatprep.subr.mxu0 0.0
    %1894 = vmatpush1.msra.mxu0 0.0
    %1895 = vmatprep.subr.mxu0 0.0
    %1896 = vmatpush1.msra.mxu0 0.0
    %1897 = vmatprep.subr.mxu0 0.0
    %1898 = vmatpush1.msra.mxu0 0.0
    %1899 = vmatprep.subr.mxu0 0.0
    %1900 = vmatpush1.msra.mxu0 0.0
    %1901 = vmatprep.subr.mxu0 0.0
    %1902 = vmatpush1.msra.mxu0 0.0
    %1903 = vmatprep.mubr.f32.mxu0 0.0
    %1904 = vmatmul.mubr.f32.gmra.mrb[0].mxu0 %v1761
    %v1905 = vpop.f32.mrb[0].mxu0
    %v1906 = vadd.f32 0.0, %v1905
    %v1907 = vpop.f32.mrb[0].mxu0
    %1908 = vdwg.mxu0
    %v1909 = vadd.f32 %v1838, %v1906
    %v1911 = vsel %vm178, %v1836, 0
    %1913 = vmatprep.subr.mxu0 0.0
    %1914 = vmatpush1.msra.mxu0 %v88
    %1915 = vmatprep.subr.mxu0 0.0
    %1916 = vmatpush1.msra.mxu0 %v89
    %1917 = vmatprep.subr.mxu0 0.0
    %1918 = vmatpush1.msra.mxu0 0.0
    %1919 = vmatprep.subr.mxu0 0.0
    %1920 = vmatpush1.msra.mxu0 0.0
    %1921 = vmatprep.subr.mxu0 0.0
    %1922 = vmatpush1.msra.mxu0 0.0
    %1923 = vmatprep.subr.mxu0 0.0
    %1924 = vmatpush1.msra.mxu0 0.0
    %1925 = vmatprep.subr.mxu0 0.0
    %1926 = vmatpush1.msra.mxu0 0.0
    %1927 = vmatprep.subr.mxu0 0.0
    %1928 = vmatpush1.msra.mxu0 0.0
    %1929 = vmatprep.subr.mxu0 0.0
    %1930 = vmatpush1.msra.mxu0 0.0
    %1931 = vmatprep.subr.mxu0 0.0
    %1932 = vmatpush1.msra.mxu0 0.0
    %1933 = vmatprep.subr.mxu0 0.0
    %1934 = vmatpush1.msra.mxu0 0.0
    %1935 = vmatprep.subr.mxu0 0.0
    %1936 = vmatpush1.msra.mxu0 0.0
    %1937 = vmatprep.subr.mxu0 0.0
    %1938 = vmatpush1.msra.mxu0 0.0
    %1939 = vmatprep.subr.mxu0 0.0
    %1940 = vmatpush1.msra.mxu0 0.0
    %1941 = vmatprep.subr.mxu0 0.0
    %1942 = vmatpush1.msra.mxu0 0.0
    %1943 = vmatprep.subr.mxu0 0.0
    %1944 = vmatpush1.msra.mxu0 0.0
    %1945 = vmatprep.subr.mxu0 0.0
    %1946 = vmatpush1.msra.mxu0 0.0
    %1947 = vmatprep.subr.mxu0 0.0
    %1948 = vmatpush1.msra.mxu0 0.0
    %1949 = vmatprep.subr.mxu0 0.0
    %1950 = vmatpush1.msra.mxu0 0.0
    %1951 = vmatprep.subr.mxu0 0.0
    %1952 = vmatpush1.msra.mxu0 0.0
    %1953 = vmatprep.subr.mxu0 0.0
    %1954 = vmatpush1.msra.mxu0 0.0
    %1955 = vmatprep.subr.mxu0 0.0
    %1956 = vmatpush1.msra.mxu0 0.0
    %1957 = vmatprep.subr.mxu0 0.0
    %1958 = vmatpush1.msra.mxu0 0.0
    %1959 = vmatprep.subr.mxu0 0.0
    %1960 = vmatpush1.msra.mxu0 0.0
    %1961 = vmatprep.subr.mxu0 0.0
    %1962 = vmatpush1.msra.mxu0 0.0
    %1963 = vmatprep.subr.mxu0 0.0
    %1964 = vmatpush1.msra.mxu0 0.0
    %1965 = vmatprep.subr.mxu0 0.0
    %1966 = vmatpush1.msra.mxu0 0.0
    %1967 = vmatprep.subr.mxu0 0.0
    %1968 = vmatpush1.msra.mxu0 0.0
    %1969 = vmatprep.subr.mxu0 0.0
    %1970 = vmatpush1.msra.mxu0 0.0
    %1971 = vmatprep.subr.mxu0 0.0
    %1972 = vmatpush1.msra.mxu0 0.0
    %1973 = vmatprep.subr.mxu0 0.0
    %1974 = vmatpush1.msra.mxu0 0.0
    %1975 = vmatprep.subr.mxu0 0.0
    %1976 = vmatpush1.msra.mxu0 0.0
    %1977 = vmatprep.mubr.f32.mxu0 0.0
    %1978 = vmatmul.mubr.f32.gmra.mrb[0].mxu0 %v1911
    %v1979 = vpop.f32.mrb[0].mxu0
    %v1980 = vadd.f32 0.0, %v1979
    %v1981 = vpop.f32.mrb[0].mxu0
    %1982 = vdwg.mxu0
    %v1983 = vadd.f32 %v1909, %v1980
    %v1984 = vtanh.pop %v1983
    %v1985 = vadd.f32 %v1984, 1.0
    %v1986 = vmul.f32 %v1985, 0.5
    %v1987 = vmul.f32 %v1986, %v1751
    %1989 = vrot.lane.b32.xlu0 %v1984, 64
    %v1990 = vpop.permute.xlu0 %1989
    %v1992 = vmul.f32 %v1986, %v1990
    %1994 = vrot.lane.b32.xlu0 %v1992, 32
    %v1995 = vpop.permute.xlu0 %1994
    %v1997 = vadd.f32 %v1987, %v1995
    %v1998 = vtanh.pop %v1997
    %2000 = vrot.lane.b32.xlu0 %v1998, 64
    %v2001 = vpop.permute.xlu0 %2000
    %v2003 = vmul.f32 %v1986, %v2001
    %2005 = vrot.lane.b32.xlu0 %v2003, 32
    %v2006 = vpop.permute.xlu0 %2005
    %v2007 = vsel %vm103, %v2006, 0
    %2009 = vmatprep.subr.mxu0 0.0
    %2010 = vmatpush1.msra.mxu0 %v94
    %2011 = vmatprep.subr.mxu0 0.0
    %2012 = vmatpush1.msra.mxu0 %v95
    %2013 = vmatprep.subr.mxu0 0.0
    %2014 = vmatpush1.msra.mxu0 %v96
    %2015 = vmatprep.subr.mxu0 0.0
    %2016 = vmatpush1.msra.mxu0 %v97
    %2017 = vmatprep.subr.mxu0 0.0
    %2018 = vmatpush1.msra.mxu0 0.0
    %2019 = vmatprep.subr.mxu0 0.0
    %2020 = vmatpush1.msra.mxu0 0.0
    %2021 = vmatprep.subr.mxu0 0.0
    %2022 = vmatpush1.msra.mxu0 0.0
    %2023 = vmatprep.subr.mxu0 0.0
    %2024 = vmatpush1.msra.mxu0 0.0
    %2025 = vmatprep.subr.mxu0 0.0
    %2026 = vmatpush1.msra.mxu0 0.0
    %2027 = vmatprep.subr.mxu0 0.0
    %2028 = vmatpush1.msra.mxu0 0.0
    %2029 = vmatprep.subr.mxu0 0.0
    %2030 = vmatpush1.msra.mxu0 0.0
    %2031 = vmatprep.subr.mxu0 0.0
    %2032 = vmatpush1.msra.mxu0 0.0
    %2033 = vmatprep.subr.mxu0 0.0
    %2034 = vmatpush1.msra.mxu0 0.0
    %2035 = vmatprep.subr.mxu0 0.0
    %2036 = vmatpush1.msra.mxu0 0.0
    %2037 = vmatprep.subr.mxu0 0.0
    %2038 = vmatpush1.msra.mxu0 0.0
    %2039 = vmatprep.subr.mxu0 0.0
    %2040 = vmatpush1.msra.mxu0 0.0
    %2041 = vmatprep.subr.mxu0 0.0
    %2042 = vmatpush1.msra.mxu0 0.0
    %2043 = vmatprep.subr.mxu0 0.0
    %2044 = vmatpush1.msra.mxu0 0.0
    %2045 = vmatprep.subr.mxu0 0.0
    %2046 = vmatpush1.msra.mxu0 0.0
    %2047 = vmatprep.subr.mxu0 0.0
    %2048 = vmatpush1.msra.mxu0 0.0
    %2049 = vmatprep.subr.mxu0 0.0
    %2050 = vmatpush1.msra.mxu0 0.0
    %2051 = vmatprep.subr.mxu0 0.0
    %2052 = vmatpush1.msra.mxu0 0.0
    %2053 = vmatprep.subr.mxu0 0.0
    %2054 = vmatpush1.msra.mxu0 0.0
    %2055 = vmatprep.subr.mxu0 0.0
    %2056 = vmatpush1.msra.mxu0 0.0
    %2057 = vmatprep.subr.mxu0 0.0
    %2058 = vmatpush1.msra.mxu0 0.0
    %2059 = vmatprep.subr.mxu0 0.0
    %2060 = vmatpush1.msra.mxu0 0.0
    %2061 = vmatprep.subr.mxu0 0.0
    %2062 = vmatpush1.msra.mxu0 0.0
    %2063 = vmatprep.subr.mxu0 0.0
    %2064 = vmatpush1.msra.mxu0 0.0
    %2065 = vmatprep.subr.mxu0 0.0
    %2066 = vmatpush1.msra.mxu0 0.0
    %2067 = vmatprep.subr.mxu0 0.0
    %2068 = vmatpush1.msra.mxu0 0.0
    %2069 = vmatprep.subr.mxu0 0.0
    %2070 = vmatpush1.msra.mxu0 0.0
    %2071 = vmatprep.subr.mxu0 0.0
    %2072 = vmatpush1.msra.mxu0 0.0
    %2073 = vmatprep.mubr.f32.mxu0 0.0
    %2074 = vmatmul.mubr.f32.gmra.mrb[0].mxu0 %v2007
    %v2075 = vpop.f32.mrb[0].mxu0
    %v2076 = vadd.f32 %v281, %v2075
    %v2077 = vpop.f32.mrb[0].mxu0
    %2078 = vdwg.mxu0
    %v2079 = vtanh.pop %v2076
    %s2080 = scalar_lea.vmem [#allocation5], 56
    %v2081 = vld [vmem:[%s2080] sm:$0xff]
    %v2082 = vmul.f32 %v2079, %v2081
    %2083 = vrot.lane.b32.xlu0 %v606, 16
    %v2084 = vpop.permute.xlu0 %2083
    %2086 = vrot.lane.b32.xlu0 %v852, 32
    %v2087 = vpop.permute.xlu0 %2086
    %2089 = vrot.lane.b32.xlu0 %v1098, 48
    %v2090 = vpop.permute.xlu0 %2089
    %2092 = vrot.lane.b32.xlu0 %v1344, 64
    %v2093 = vpop.permute.xlu0 %2092
    %2095 = vrot.lane.b32.xlu0 %v1590, 80
    %v2096 = vpop.permute.xlu0 %2095
    %2098 = vrot.lane.b32.xlu0 %v1836, 96
    %v2099 = vpop.permute.xlu0 %2098
    %2102 = vrot.lane.b32.xlu0 %v2082, 112
    %v2103 = vpop.permute.xlu0 %2102
    %v2105 = vsel %vm178, %v360, %v2084
    %v2106 = vsel %vm103, %v2105, %v2087
    %vm2107 = vcmask 392192
    %v2108 = vsel %vm2107, %v2106, %v2090
    %vm2109 = vcmask 523264
    %v2110 = vsel %vm2109, %v2108, %v2093
    %vm2111 = vcmask 654336
    %v2112 = vsel %vm2111, %v2110, %v2096
    %vm2113 = vcmask 785408
    %v2114 = vsel %vm2113, %v2112, %v2099
    %vm2115 = vcmask 916480
    %v2116 = vsel %vm2115, %v2114, %v2103
    %2117 = vst [vmem:[#allocation10] sm:$0xff] %v2116
    %2119 = vst.msk [vmem:[#allocation11] sm:$0xff] %vm103, %v2006
    %2121 = vrot.lane.b32.xlu0 %v1997, 96
    %v2122 = vpop.permute.xlu0 %2121
    %2124 = vst.msk [vmem:[#allocation13] sm:$0xff] %vm103, %v2122
    // Predicated region
    $region54: #{tpu_custom_call.1} parent=1 // pred_check
      _
    $region55: #{tpu_custom_call.1} parent=1 // pred_check_branch
      %2126 = sbr.rel (0) target = $region57
    $region56: #{tpu_custom_call.1} parent=1 // pred_region
      %s2128 = ssub.s32 128, 128
      %2129 = vsyncadd [#allocation4], %s2128
      %s2131 = sshll.u32 [#allocation10], 4
      %s2132 = int_to_ptr.vmem [resolvable:$true] %s2131
      %2134 = dma.vmem_to_hbm [thread:$0]  %s2132, 128, %s9, [#allocation4]
    $region57: #{tpu_custom_call.1} parent=1 // pred_fallthru
      _
    // Predicated region
    $region58: #{tpu_custom_call.1} parent=1 // pred_check
      _
    $region59: #{tpu_custom_call.1} parent=1 // pred_check_branch
      %2136 = sbr.rel (0) target = $region61
    $region60: #{tpu_custom_call.1} parent=1 // pred_region
      %s2138 = ssub.s32 128, 128
      %2139 = vsyncadd [#allocation12], %s2138
      %s2141 = sshll.u32 [#allocation11], 4
      %s2142 = int_to_ptr.vmem [resolvable:$true] %s2141
      %2144 = dma.vmem_to_hbm [thread:$0]  %s2142, 128, %s10, [#allocation12]
    $region61: #{tpu_custom_call.1} parent=1 // pred_fallthru
      _
    // Predicated region
    $region62: #{tpu_custom_call.1} parent=1 // pred_check
      _
    $region63: #{tpu_custom_call.1} parent=1 // pred_check_branch
      %2146 = sbr.rel (0) target = $region65
    $region64: #{tpu_custom_call.1} parent=1 // pred_region
      %s2148 = ssub.s32 128, 128
      %2149 = vsyncadd [#allocation12], %s2148
      %s2151 = sshll.u32 [#allocation13], 4
      %s2152 = int_to_ptr.vmem [resolvable:$true] %s2151
      %2154 = dma.vmem_to_hbm [thread:$0]  %s2152, 128, %s11, [#allocation12]
    $region65: #{tpu_custom_call.1} parent=1 // pred_fallthru
      _
    // Predicated region
    $region66: #{tpu_custom_call.1} parent=1 // pred_check
      _
    $region67: #{tpu_custom_call.1} parent=1 // pred_check_branch
      %2156 = sbr.rel (0) target = $region69
    $region68: #{tpu_custom_call.1} parent=1 // pred_region
      %2157 = dma.done [#allocation4], 128
    $region69: #{tpu_custom_call.1} parent=1 // pred_fallthru
      _
    // Predicated region
    $region70: #{tpu_custom_call.1} parent=1 // pred_check
      _
    $region71: #{tpu_custom_call.1} parent=1 // pred_check_branch
      %2159 = sbr.rel (0) target = $region73
    $region72: #{tpu_custom_call.1} parent=1 // pred_region
      %2160 = dma.done [#allocation12], 128
    $region73: #{tpu_custom_call.1} parent=1 // pred_fallthru
      _
    // Predicated region
    $region74: #{tpu_custom_call.1} parent=1 // pred_check
      _
    $region75: #{tpu_custom_call.1} parent=1 // pred_check_branch
      %2162 = sbr.rel (0) target = $region77
    $region76: #{tpu_custom_call.1} parent=1 // pred_region
      %2163 = dma.done [#allocation12], 128
    $region77: #{tpu_custom_call.1} parent=1 // pred_fallthru
      _
    %2164 = vsyncpa [#allocation3], 1
    %2165 = vsyncpa [#allocation6], 1
    %2166 = vsyncpa [#allocation9], 1
    %2167 = vsyncpa [#allocation4], 1
    %2168 = vsyncpa [#allocation12], 1

</llo_original>
